<compile_context>
chip_gen: v6e
topology: v6e:2x2x1
jax: 0.10.0
libtpu: 0.0.40
codegen_flags: <defaults>
</compile_context>

<pallas_src>
import functools

import jax
import jax.numpy as jnp
from jax.experimental import pallas as pl
from jax.experimental.pallas import tpu as pltpu

LN_EPS = 1e-5  # torch.nn.LayerNorm default


def node_network_kernel(
    x_ref, e_ref, start_ref, end_ref,
    w1a_ref, w1b_ref, b1_ref, g1_ref, bt1_ref,
    w2_ref, b2_ref, g2_ref, bt2_ref,
    w3_ref, b3_ref,
    out_ref,
    msg_ref,
    *, matmul_dtype, true_h,
):
    et = pl.program_id(1)

    @pl.when(et == 0)
    def _():
        msg_ref[...] = jnp.zeros_like(msg_ref)

    x = x_ref[...]                      # [N, D] f32   (batch dim squeezed)
    e = e_ref[...]                      # [tE, 1] f32
    start = start_ref[...]              # [tE, 1] i32
    end = end_ref[...]                  # [tE, 1] i32
    N = x.shape[0]
    tE = e.shape[0]

    # Two 0/1 one-hots only (exact in bf16).  The edge weight is applied to the
    # gathered [tE, D] features in f32 — N/D times cheaper than [tE, N] selects.
    iota_en = jax.lax.broadcasted_iota(jnp.int32, (tE, N), 1)
    oh_start = (start == iota_en).astype(matmul_dtype)             # [tE, N]
    oh_end = (end == iota_en).astype(matmul_dtype)

    xm = x.astype(matmul_dtype)
    x_start = jnp.dot(oh_start, xm, preferred_element_type=jnp.float32) * e  # [tE, D]
    x_end = jnp.dot(oh_end, xm, preferred_element_type=jnp.float32) * e

    # scatter_add == contraction over the edge axis: [tE,N] . [tE,D] -> [N,D]
    contract_e = (((0,), (0,)), ((), ()))
    msg_ref[...] += (
        jax.lax.dot_general(oh_end, x_start.astype(matmul_dtype), contract_e,
                            preferred_element_type=jnp.float32)
        + jax.lax.dot_general(oh_start, x_end.astype(matmul_dtype), contract_e,
                              preferred_element_type=jnp.float32)
    )

    @pl.when(et == pl.num_programs(1) - 1)
    def _():
        messages = msg_ref[...]                                   # [N, D] f32
        hp = b1_ref.shape[-1]
        inv_h = 1.0 / true_h
        if hp != true_h:
            lane_mask = (jax.lax.broadcasted_iota(jnp.int32, (1, hp), 1)
                         < true_h).astype(jnp.float32)
        else:
            lane_mask = None

        def layernorm(z, g, b):
            # Statistics over the true H lanes only; padded lanes of z are 0,
            # padded lanes of g/b are 0, so padded output lanes stay exactly 0.
            mu = jnp.sum(z, axis=-1, keepdims=True) * inv_h
            zc = z - mu
            if lane_mask is not None:
                zc = zc * lane_mask
            var = jnp.sum(zc * zc, axis=-1, keepdims=True) * inv_h
            return zc * jax.lax.rsqrt(var + LN_EPS) * g + b

        # concat([messages, x], 1) @ W1  ==  messages @ W1a + x @ W1b
        h = (
            jnp.dot(messages.astype(matmul_dtype), w1a_ref[...],
                    preferred_element_type=jnp.float32)
            + jnp.dot(xm, w1b_ref[...], preferred_element_type=jnp.float32)
            + b1_ref[...]
        )
        h = jnp.tanh(layernorm(h, g1_ref[...], bt1_ref[...]))
        h = jnp.dot(h.astype(matmul_dtype), w2_ref[...],
                    preferred_element_type=jnp.float32) + b2_ref[...]
        h = jnp.tanh(layernorm(h, g2_ref[...], bt2_ref[...]))
        h = jnp.dot(h.astype(matmul_dtype), w3_ref[...],
                    preferred_element_type=jnp.float32) + b3_ref[...]
        out_ref[...] = h.astype(out_ref.dtype)


def _round_up(v, m):
    return (v + m - 1) // m * m


def _vmem_limit_bytes():
    """Per-generation scoped-VMEM limit (v5e/v6e: 128 MiB phys; v7x: 64 MiB)."""
    try:
        cap = int(getattr(pltpu.get_tpu_info(), "vmem_capacity_bytes"))
    except Exception:
        cap = 64 * 1024 * 1024
    if cap >= 100 * 1024 * 1024:
        return 100 * 1024 * 1024          # v5e / v6e: lots of headroom
    return 48 * 1024 * 1024               # v7x: leave DMA headroom under 64 MiB


def _pick_edge_tile(E, N, D, Hp, item, vmem_limit, max_tile):
    """Largest aligned edge tile whose live intermediates fit the VMEM budget."""
    lane = lambda v: _round_up(max(v, 1), 128)
    sub = lambda v: _round_up(max(v, 1), 8)
    f32 = 4
    # Resident buffers: double-buffered x/out blocks, msg scratch, pinned weights.
    fixed = (
        2 * sub(N) * lane(D) * f32                              # x block
        + 2 * sub(N) * lane(Hp) * f32                           # out block
        + sub(N) * lane(D) * f32                                # msg scratch
        + 2 * (2 * sub(D) + 2 * sub(Hp)) * lane(Hp) * item      # W1a/W1b/W2/W3
        + 2 * 7 * sub(1) * lane(Hp) * f32                       # biases / LN params
    )
    # Per-edge-row cost: three lane-padded (tile,1) blocks (double-buffered)
    # plus the in-flight [tile, N] iota / compare masks / two one-hots.
    per_edge = 3 * 2 * 128 * f32 + lane(N) * (4 + 2 * 4 + 2 * item)
    budget = int(vmem_limit * 0.75)
    align = 8 * (4 // item)                  # 16 rows for bf16, 8 for f32
    tile = max((budget - fixed) // per_edge, align)
    tile = min(tile, max_tile)
    tile = max((tile // align) * align, align)
    if E <= tile:
        return E                             # single full-extent tile
    return tile


def node_network_forward_batched(x, e, edge_index, params, *,
                                 matmul_dtype=jnp.bfloat16,
                                 tile_e=None, max_tile_e=8192):
    """Batched forward.  x: [B,N,D], e: [B,E], edge_index: [B,2,E] -> [B,N,H].

    Edge indices must lie in [0, N); out-of-range indices contribute nothing
    (all-zero one-hot row).  Padded edges carry e == 0 and contribute nothing.
    """
    B, N, D = x.shape
    E = e.shape[-1]
    H = params["w3"].shape[1]
    Hp = _round_up(H, 128)
    item = jnp.dtype(matmul_dtype).itemsize

    # Degenerate graphs: one zero-weight dummy tile -> messages stay zero.
    if E == 0:
        E = 8
        e = jnp.zeros((B, E), jnp.float32)
        edge_index = jnp.zeros((B, 2, E), jnp.int32)

    vmem_limit = _vmem_limit_bytes()
    if tile_e is None:
        tile = _pick_edge_tile(E, N, D, Hp, item, vmem_limit, max_tile_e)
    else:
        align = 8 * (4 // item)
        tile = E if E <= tile_e else max((tile_e // align) * align, align)
    e_pad = pl.cdiv(E, tile) * tile
    n_et = e_pad // tile
    pad = e_pad - E

    e2 = e.reshape(B, E, 1).astype(jnp.float32)
    edge_index = jnp.asarray(edge_index)
    start = edge_index[:, 0, :].reshape(B, E, 1).astype(jnp.int32)
    end = edge_index[:, 1, :].reshape(B, E, 1).astype(jnp.int32)
    if pad:
        e2 = jnp.pad(e2, ((0, 0), (0, pad), (0, 0)))
        start = jnp.pad(start, ((0, 0), (0, pad), (0, 0)))
        end = jnp.pad(end, ((0, 0), (0, pad), (0, 0)))

    def pad_cols(w):
        return jnp.pad(w, ((0, 0), (0, Hp - H)))

    def pad_rows_cols(w):
        return jnp.pad(w, ((0, Hp - H), (0, Hp - H)))

    # Split W1 so the in-kernel concat becomes two matmuls; zero-pad H -> Hp so
    # every MLP output (and the final store) is lane-dense.
    w1a = pad_cols(params["w1"][:D]).astype(matmul_dtype)   # acts on `messages`
    w1b = pad_cols(params["w1"][D:]).astype(matmul_dtype)   # acts on `x`
    w2 = pad_rows_cols(params["w2"]).astype(matmul_dtype)
    w3 = pad_rows_cols(params["w3"]).astype(matmul_dtype)
    b1, g1, bt1 = (pad_cols(params[k]).astype(jnp.float32) for k in ("b1", "g1", "bt1"))
    b2, g2, bt2 = (pad_cols(params[k]).astype(jnp.float32) for k in ("b2", "g2", "bt2"))
    b3 = pad_cols(params["b3"]).astype(jnp.float32)

    inputs = (
        x.astype(jnp.float32), e2, start, end,
        w1a, w1b, b1, g1, bt1,
        w2, b2, g2, bt2,
        w3, b3,
    )

    def pinned(shape):   # constant-index blocks stay VMEM-resident across steps
        nd = len(shape)
        return pl.BlockSpec(shape, lambda b, t, nd=nd: (0,) * nd)

    in_specs = [
        pl.BlockSpec((None, N, D), lambda b, t: (b, 0, 0)),      # x
        pl.BlockSpec((None, tile, 1), lambda b, t: (b, t, 0)),   # e
        pl.BlockSpec((None, tile, 1), lambda b, t: (b, t, 0)),   # start
        pl.BlockSpec((None, tile, 1), lambda b, t: (b, t, 0)),   # end
    ] + [pinned(a.shape) for a in inputs[4:]]

    out_specs = pl.BlockSpec((None, N, Hp), lambda b, t: (b, 0, 0))

    flops = B * (8 * e_pad * N * D + 4 * N * D * Hp + 4 * N * Hp * Hp)
    bytes_accessed = (sum(int(a.size) * a.dtype.itemsize for a in inputs)
                      + B * N * Hp * 4)

    kernel = functools.partial(node_network_kernel,
                               matmul_dtype=matmul_dtype, true_h=H)
    out = pl.pallas_call(
        kernel,
        out_shape=jax.ShapeDtypeStruct((B, N, Hp), jnp.float32),
        grid=(B, n_et),
        in_specs=in_specs,
        out_specs=out_specs,
        scratch_shapes=[pltpu.VMEM((N, D), jnp.float32)],        # messages accumulator
        compiler_params=pltpu.CompilerParams(
            dimension_semantics=("parallel", "arbitrary"),
            vmem_limit_bytes=int(vmem_limit),
        ),
        cost_estimate=pl.CostEstimate(
            flops=int(flops),
            transcendentals=int(2 * B * N * Hp),
            bytes_accessed=int(bytes_accessed),
        ),
    )(*inputs)
    return out[:, :, :H]


def node_network_forward(x, e, edge_index, params, **kwargs):
    """Single-graph API matching the PyTorch module's forward(x, e, edge_index)."""
    out = node_network_forward_batched(
        x[None], jnp.asarray(e)[None], jnp.asarray(edge_index)[None], params, **kwargs)
    return out[0]


def reference_forward(x, e, edge_index, params):
    """Pure-JAX reference mirroring the PyTorch forward (single graph)."""
    N, D = x.shape
    start, end = edge_index[0], edge_index[1]
    w_s = e[:, None] * x[start]
    w_e = e[:, None] * x[end]
    messages = (
        jnp.zeros((N, D), jnp.float32).at[end].add(w_s)
        + jnp.zeros((N, D), jnp.float32).at[start].add(w_e)
    )
    h = jnp.concatenate([messages, x], axis=1)

    def ln(z, g, b):
        mu = jnp.mean(z, axis=-1, keepdims=True)
        var = jnp.mean((z - mu) ** 2, axis=-1, keepdims=True)
        return (z - mu) * jax.lax.rsqrt(var + LN_EPS) * g + b

    h = jnp.tanh(ln(h @ params["w1"] + params["b1"], params["g1"], params["bt1"]))
    h = jnp.tanh(ln(h @ params["w2"] + params["b2"], params["g2"], params["bt2"]))
    return h @ params["w3"] + params["b3"]


def init_params(key, input_dim, output_dim):
    """PyTorch-style init. nb_layers=3 -> 2 hidden (Linear+LN+Tanh) + final Linear."""
    ks = jax.random.split(key, 6)

    def linear(kw, kb, fan_in, fan_out):
        bound = 1.0 / jnp.sqrt(fan_in)
        w = jax.random.uniform(kw, (fan_in, fan_out), jnp.float32, -bound, bound)
        b = jax.random.uniform(kb, (1, fan_out), jnp.float32, -bound, bound)
        return w, b

    w1, b1 = linear(ks[0], ks[1], 2 * input_dim, output_dim)
    w2, b2 = linear(ks[2], ks[3], output_dim, output_dim)
    w3, b3 = linear(ks[4], ks[5], output_dim, output_dim)
    ones = jnp.ones((1, output_dim), jnp.float32)
    zeros = jnp.zeros((1, output_dim), jnp.float32)
    return {
        "w1": w1, "b1": b1, "g1": ones, "bt1": zeros,
        "w2": w2, "b2": b2, "g2": ones, "bt2": zeros,
        "w3": w3, "b3": b3,
    }


if __name__ == "__main__":
    # Small batch of synthetic graphs: B graphs, N nodes, E directed edges each.
    B, N, D, E = 4, 16, 8, 32          # input_dim=8
    OUT = 32                           # output_dim=32, nb_layers=3

    key = jax.random.PRNGKey(0)
    kx, ke, ki, kp = jax.random.split(key, 4)
    x = jax.random.normal(kx, (B, N, D), jnp.float32)
    e = jax.random.uniform(ke, (B, E), jnp.float32)
    edge_index = jax.random.randint(ki, (B, 2, E), 0, N, jnp.int32)
    params = init_params(kp, D, OUT)

    ref = jax.vmap(reference_forward, in_axes=(0, 0, 0, None))(x, e, edge_index, params)
    ref = jax.block_until_ready(ref)

    # Default bf16 MXU-operand path (one-hots exact; e applied in f32; f32 accum).
    out_bf16 = jax.block_until_ready(
        node_network_forward_batched(x, e, edge_index, params))
    assert out_bf16.shape == (B, N, OUT)
    assert jnp.allclose(out_bf16, ref, rtol=5e-2, atol=5e-2), "bf16 kernel drifted too far"

    # f32 operand path (tightest accuracy).
    out_f32 = jax.block_until_ready(
        node_network_forward_batched(x, e, edge_index, params,
                                     matmul_dtype=jnp.float32))
    assert jnp.allclose(out_f32, ref, rtol=1e-3, atol=1e-3), "f32 kernel mismatch vs. reference"

    # Single-graph API parity with the PyTorch module.
    out1 = jax.block_until_ready(node_network_forward(x[0], e[0], edge_index[0], params))
    assert jnp.allclose(out1, ref[0], rtol=5e-2, atol=5e-2), "single-graph mismatch"

    # Degenerate E == 0 graph: messages must be exactly zero.
    e0 = jnp.zeros((0,), jnp.float32)
    ei0 = jnp.zeros((2, 0), jnp.int32)
    ref0 = reference_forward(x[0], e0, ei0, params)
    out0 = jax.block_until_ready(node_network_forward(x[0], e0, ei0, params))
    assert jnp.allclose(out0, ref0, rtol=5e-2, atol=5e-2), "E=0 mismatch"

    print("KERNEL_OK")
</pallas_src>

<mosaic_0001>
module attributes {stable_mosaic.version = 11 : i64} {
  func.func @node_network_kernel(%arg0: i32, %arg1: i32, %arg2: memref<1x16x8xf32, #tpu.memory_space<vmem>>, %arg3: memref<1x32x1xf32, #tpu.memory_space<vmem>>, %arg4: memref<1x32x1xi32, #tpu.memory_space<vmem>>, %arg5: memref<1x32x1xi32, #tpu.memory_space<vmem>>, %arg6: memref<8x128xbf16, #tpu.memory_space<vmem>>, %arg7: memref<8x128xbf16, #tpu.memory_space<vmem>>, %arg8: memref<1x128xf32, #tpu.memory_space<vmem>>, %arg9: memref<1x128xf32, #tpu.memory_space<vmem>>, %arg10: memref<1x128xf32, #tpu.memory_space<vmem>>, %arg11: memref<128x128xbf16, #tpu.memory_space<vmem>>, %arg12: memref<1x128xf32, #tpu.memory_space<vmem>>, %arg13: memref<1x128xf32, #tpu.memory_space<vmem>>, %arg14: memref<1x128xf32, #tpu.memory_space<vmem>>, %arg15: memref<128x128xbf16, #tpu.memory_space<vmem>>, %arg16: memref<1x128xf32, #tpu.memory_space<vmem>>, %arg17: memref<1x16x128xf32, #tpu.memory_space<vmem>>, %arg18: memref<16x8xf32, #tpu.memory_space<vmem>>) attributes {dimension_semantics = [#tpu.dimension_semantics<parallel>, #tpu.dimension_semantics<arbitrary>], iteration_bounds = array<i64: 4, 1>, scalar_prefetch = 0 : i64, scratch_operands = 1 : i64, tpu.core_type = #tpu.core_type<tc>, window_params = [{transform_indices = @transform_0, window_bounds = array<i64: 1, 16, 8>}, {transform_indices = @transform_1, window_bounds = array<i64: 1, 32, 1>}, {transform_indices = @transform_2, window_bounds = array<i64: 1, 32, 1>}, {transform_indices = @transform_3, window_bounds = array<i64: 1, 32, 1>}, {pipeline_mode = #tpu.pipeline_mode<synchronous>, transform_indices = @transform_4, window_bounds = array<i64: 8, 128>}, {pipeline_mode = #tpu.pipeline_mode<synchronous>, transform_indices = @transform_5, window_bounds = array<i64: 8, 128>}, {pipeline_mode = #tpu.pipeline_mode<synchronous>, transform_indices = @transform_6, window_bounds = array<i64: 1, 128>}, {pipeline_mode = #tpu.pipeline_mode<synchronous>, transform_indices = @transform_7, window_bounds = array<i64: 1, 128>}, {pipeline_mode = #tpu.pipeline_mode<synchronous>, transform_indices = @transform_8, window_bounds = array<i64: 1, 128>}, {pipeline_mode = #tpu.pipeline_mode<synchronous>, transform_indices = @transform_9, window_bounds = array<i64: 128, 128>}, {pipeline_mode = #tpu.pipeline_mode<synchronous>, transform_indices = @transform_10, window_bounds = array<i64: 1, 128>}, {pipeline_mode = #tpu.pipeline_mode<synchronous>, transform_indices = @transform_11, window_bounds = array<i64: 1, 128>}, {pipeline_mode = #tpu.pipeline_mode<synchronous>, transform_indices = @transform_12, window_bounds = array<i64: 1, 128>}, {pipeline_mode = #tpu.pipeline_mode<synchronous>, transform_indices = @transform_13, window_bounds = array<i64: 128, 128>}, {pipeline_mode = #tpu.pipeline_mode<synchronous>, transform_indices = @transform_14, window_bounds = array<i64: 1, 128>}, {transform_indices = @transform_15, window_bounds = array<i64: 1, 16, 128>}]} {
    %c0_i32 = arith.constant 0 : i32
    %0 = arith.cmpi eq, %arg1, %c0_i32 : i32
    %1 = arith.extui %0 : i1 to i32
    %c0_i32_0 = arith.constant 0 : i32
    %2 = arith.cmpi ne, %1, %c0_i32_0 : i32
    scf.if %2 {
      %cst_21 = arith.constant 0.000000e+00 : f32
      %40 = vector.broadcast %cst_21 : f32 to vector<16x8xf32>
      %c0_22 = arith.constant 0 : index
      %c0_23 = arith.constant 0 : index
      %41 = vector.load %arg18[%c0_22, %c0_23] : memref<16x8xf32, #tpu.memory_space<vmem>>, vector<16x8xf32>
      tpu.vector_store %arg18[%c0_22, %c0_23], %40 {strides = array<i32>} : memref<16x8xf32, #tpu.memory_space<vmem>>, vector<16x8xf32>,
    } else {
    }
    %c0 = arith.constant 0 : index
    %c0_1 = arith.constant 0 : index
    %c0_2 = arith.constant 0 : index
    %3 = vector.load %arg2[%c0, %c0_1, %c0_2] : memref<1x16x8xf32, #tpu.memory_space<vmem>>, vector<1x16x8xf32>
    %4 = vector.shape_cast %3 : vector<1x16x8xf32> to vector<16x8xf32>
    %c0_3 = arith.constant 0 : index
    %c0_4 = arith.constant 0 : index
    %c0_5 = arith.constant 0 : index
    %5 = vector.load %arg3[%c0_3, %c0_4, %c0_5] : memref<1x32x1xf32, #tpu.memory_space<vmem>>, vector<1x32x1xf32>
    %6 = vector.shape_cast %5 : vector<1x32x1xf32> to vector<32x1xf32>
    %c0_6 = arith.constant 0 : index
    %c0_7 = arith.constant 0 : index
    %c0_8 = arith.constant 0 : index
    %7 = vector.load %arg4[%c0_6, %c0_7, %c0_8] : memref<1x32x1xi32, #tpu.memory_space<vmem>>, vector<1x32x1xi32>
    %8 = vector.shape_cast %7 : vector<1x32x1xi32> to vector<32x1xi32>
    %c0_9 = arith.constant 0 : index
    %c0_10 = arith.constant 0 : index
    %c0_11 = arith.constant 0 : index
    %9 = vector.load %arg5[%c0_9, %c0_10, %c0_11] : memref<1x32x1xi32, #tpu.memory_space<vmem>>, vector<1x32x1xi32>
    %10 = vector.shape_cast %9 : vector<1x32x1xi32> to vector<32x1xi32>
    %11 = tpu.iota {dimensions = array<i32: 1>} : vector<32x16xi32>
    %12 = vector.broadcast %8 : vector<32x1xi32> to vector<32x16xi32>
    %13 = arith.cmpi eq, %12, %11 : vector<32x16xi32>
    %14 = arith.extui %13 : vector<32x16xi1> to vector<32x16xi32>
    %15 = arith.sitofp %14 : vector<32x16xi32> to vector<32x16xf32>
    %16 = arith.truncf %15 : vector<32x16xf32> to vector<32x16xbf16>
    %17 = vector.broadcast %10 : vector<32x1xi32> to vector<32x16xi32>
    %18 = arith.cmpi eq, %17, %11 : vector<32x16xi32>
    %19 = arith.extui %18 : vector<32x16xi1> to vector<32x16xi32>
    %20 = arith.sitofp %19 : vector<32x16xi32> to vector<32x16xf32>
    %21 = arith.truncf %20 : vector<32x16xf32> to vector<32x16xbf16>
    %22 = arith.truncf %4 : vector<16x8xf32> to vector<16x8xbf16>
    %cst = arith.constant dense<0.000000e+00> : vector<32x8xf32>
    %23 = tpu.matmul %16, %22, %cst {dimension_numbers = #tpu.dot_dimension_numbers<[1], [0], [0], [1], [0, 0, 1, 1], [], []>} : vector<32x16xbf16>, vector<16x8xbf16>, vector<32x8xf32> -> vector<32x8xf32>
    %24 = vector.broadcast %6 : vector<32x1xf32> to vector<32x8xf32>
    %25 = arith.mulf %23, %24 : vector<32x8xf32>
    %cst_12 = arith.constant dense<0.000000e+00> : vector<32x8xf32>
    %26 = tpu.matmul %21, %22, %cst_12 {dimension_numbers = #tpu.dot_dimension_numbers<[1], [0], [0], [1], [0, 0, 1, 1], [], []>} : vector<32x16xbf16>, vector<16x8xbf16>, vector<32x8xf32> -> vector<32x8xf32>
    %27 = vector.broadcast %6 : vector<32x1xf32> to vector<32x8xf32>
    %28 = arith.mulf %26, %27 : vector<32x8xf32>
    %c0_13 = arith.constant 0 : index
    %c0_14 = arith.constant 0 : index
    %29 = vector.load %arg18[%c0_13, %c0_14] : memref<16x8xf32, #tpu.memory_space<vmem>>, vector<16x8xf32>
    %30 = arith.truncf %25 : vector<32x8xf32> to vector<32x8xbf16>
    %cst_15 = arith.constant dense<0.000000e+00> : vector<16x8xf32>
    %31 = tpu.matmul %21, %30, %cst_15 {dimension_numbers = #tpu.dot_dimension_numbers<[0], [0], [1], [1], [0, 1, 1, 1], [], []>} : vector<32x16xbf16>, vector<32x8xbf16>, vector<16x8xf32> -> vector<16x8xf32>
    %32 = arith.truncf %28 : vector<32x8xf32> to vector<32x8xbf16>
    %cst_16 = arith.constant dense<0.000000e+00> : vector<16x8xf32>
    %33 = tpu.matmul %16, %32, %cst_16 {dimension_numbers = #tpu.dot_dimension_numbers<[0], [0], [1], [1], [0, 1, 1, 1], [], []>} : vector<32x16xbf16>, vector<32x8xbf16>, vector<16x8xf32> -> vector<16x8xf32>
    %34 = arith.addf %31, %33 : vector<16x8xf32>
    %35 = arith.addf %29, %34 : vector<16x8xf32>
    %c0_17 = arith.constant 0 : index
    %c0_18 = arith.constant 0 : index
    %36 = vector.load %arg18[%c0_17, %c0_18] : memref<16x8xf32, #tpu.memory_space<vmem>>, vector<16x8xf32>
    tpu.vector_store %arg18[%c0_17, %c0_18], %35 {strides = array<i32>} : memref<16x8xf32, #tpu.memory_space<vmem>>, vector<16x8xf32>,
    %c0_i32_19 = arith.constant 0 : i32
    %37 = arith.cmpi eq, %arg1, %c0_i32_19 : i32
    %38 = arith.extui %37 : i1 to i32
    %c0_i32_20 = arith.constant 0 : i32
    %39 = arith.cmpi ne, %38, %c0_i32_20 : i32
    scf.if %39 {
      %c0_21 = arith.constant 0 : index
      %c0_22 = arith.constant 0 : index
      %40 = vector.load %arg18[%c0_21, %c0_22] : memref<16x8xf32, #tpu.memory_space<vmem>>, vector<16x8xf32>
      %41 = tpu.iota {dimensions = array<i32: 1>} : vector<1x128xi32>
      %c32_i32 = arith.constant 32 : i32
      %42 = vector.broadcast %c32_i32 : i32 to vector<1x128xi32>
      %43 = arith.cmpi slt, %41, %42 : vector<1x128xi32>
      %44 = arith.extui %43 : vector<1x128xi1> to vector<1x128xi32>
      %45 = arith.sitofp %44 : vector<1x128xi32> to vector<1x128xf32>
      %46 = arith.truncf %40 : vector<16x8xf32> to vector<16x8xbf16>
      %c0_23 = arith.constant 0 : index
      %c0_24 = arith.constant 0 : index
      %47 = vector.load %arg6[%c0_23, %c0_24] : memref<8x128xbf16, #tpu.memory_space<vmem>>, vector<8x128xbf16>
      %cst_25 = arith.constant dense<0.000000e+00> : vector<16x128xf32>
      %48 = tpu.matmul %46, %47, %cst_25 {dimension_numbers = #tpu.dot_dimension_numbers<[1], [0], [0], [1], [0, 0, 1, 1], [], []>} : vector<16x8xbf16>, vector<8x128xbf16>, vector<16x128xf32> -> vector<16x128xf32>
      %c0_26 = arith.constant 0 : index
      %c0_27 = arith.constant 0 : index
      %49 = vector.load %arg7[%c0_26, %c0_27] : memref<8x128xbf16, #tpu.memory_space<vmem>>, vector<8x128xbf16>
      %cst_28 = arith.constant dense<0.000000e+00> : vector<16x128xf32>
      %50 = tpu.matmul %22, %49, %cst_28 {dimension_numbers = #tpu.dot_dimension_numbers<[1], [0], [0], [1], [0, 0, 1, 1], [], []>} : vector<16x8xbf16>, vector<8x128xbf16>, vector<16x128xf32> -> vector<16x128xf32>
      %51 = arith.addf %48, %50 : vector<16x128xf32>
      %c0_29 = arith.constant 0 : index
      %c0_30 = arith.constant 0 : index
      %52 = vector.load %arg8[%c0_29, %c0_30] : memref<1x128xf32, #tpu.memory_space<vmem>>, vector<1x128xf32>
      %53 = vector.broadcast %52 : vector<1x128xf32> to vector<16x128xf32>
      %54 = arith.addf %51, %53 : vector<16x128xf32>
      %c0_31 = arith.constant 0 : index
      %c0_32 = arith.constant 0 : index
      %55 = vector.load %arg9[%c0_31, %c0_32] : memref<1x128xf32, #tpu.memory_space<vmem>>, vector<1x128xf32>
      %c0_33 = arith.constant 0 : index
      %c0_34 = arith.constant 0 : index
      %56 = vector.load %arg10[%c0_33, %c0_34] : memref<1x128xf32, #tpu.memory_space<vmem>>, vector<1x128xf32>
      %cst_35 = arith.constant dense<0.000000e+00> : vector<16xf32>
      %57 = vector.multi_reduction <add>, %54, %cst_35 [1] : vector<16x128xf32> to vector<16xf32>
      %58 = vector.shape_cast %57 : vector<16xf32> to vector<16x1xf32>
      %cst_36 = arith.constant 3.125000e-02 : f32
      %59 = vector.broadcast %cst_36 : f32 to vector<16x1xf32>
      %60 = arith.mulf %58, %59 : vector<16x1xf32>
      %61 = vector.broadcast %60 : vector<16x1xf32> to vector<16x128xf32>
      %62 = arith.subf %54, %61 : vector<16x128xf32>
      %63 = vector.broadcast %45 : vector<1x128xf32> to vector<16x128xf32>
      %64 = arith.mulf %62, %63 : vector<16x128xf32>
      %65 = arith.mulf %64, %64 : vector<16x128xf32>
      %cst_37 = arith.constant dense<0.000000e+00> : vector<16xf32>
      %66 = vector.multi_reduction <add>, %65, %cst_37 [1] : vector<16x128xf32> to vector<16xf32>
      %67 = vector.shape_cast %66 : vector<16xf32> to vector<16x1xf32>
      %cst_38 = arith.constant 3.125000e-02 : f32
      %68 = vector.broadcast %cst_38 : f32 to vector<16x1xf32>
      %69 = arith.mulf %67, %68 : vector<16x1xf32>
      %cst_39 = arith.constant 9.99999974E-6 : f32
      %70 = vector.broadcast %cst_39 : f32 to vector<16x1xf32>
      %71 = arith.addf %69, %70 : vector<16x1xf32>
      %72 = math.rsqrt %71 : vector<16x1xf32>
      %73 = vector.broadcast %72 : vector<16x1xf32> to vector<16x128xf32>
      %74 = arith.mulf %64, %73 : vector<16x128xf32>
      %75 = vector.broadcast %55 : vector<1x128xf32> to vector<16x128xf32>
      %76 = arith.mulf %74, %75 : vector<16x128xf32>
      %77 = vector.broadcast %56 : vector<1x128xf32> to vector<16x128xf32>
      %78 = arith.addf %76, %77 : vector<16x128xf32>
      %79 = math.tanh %78 : vector<16x128xf32>
      %80 = arith.truncf %79 : vector<16x128xf32> to vector<16x128xbf16>
      %c0_40 = arith.constant 0 : index
      %c0_41 = arith.constant 0 : index
      %81 = vector.load %arg11[%c0_40, %c0_41] : memref<128x128xbf16, #tpu.memory_space<vmem>>, vector<128x128xbf16>
      %cst_42 = arith.constant dense<0.000000e+00> : vector<16x128xf32>
      %82 = tpu.matmul %80, %81, %cst_42 {dimension_numbers = #tpu.dot_dimension_numbers<[1], [0], [0], [1], [0, 0, 1, 1], [], []>} : vector<16x128xbf16>, vector<128x128xbf16>, vector<16x128xf32> -> vector<16x128xf32>
      %c0_43 = arith.constant 0 : index
      %c0_44 = arith.constant 0 : index
      %83 = vector.load %arg12[%c0_43, %c0_44] : memref<1x128xf32, #tpu.memory_space<vmem>>, vector<1x128xf32>
      %84 = vector.broadcast %83 : vector<1x128xf32> to vector<16x128xf32>
      %85 = arith.addf %82, %84 : vector<16x128xf32>
      %c0_45 = arith.constant 0 : index
      %c0_46 = arith.constant 0 : index
      %86 = vector.load %arg13[%c0_45, %c0_46] : memref<1x128xf32, #tpu.memory_space<vmem>>, vector<1x128xf32>
      %c0_47 = arith.constant 0 : index
      %c0_48 = arith.constant 0 : index
      %87 = vector.load %arg14[%c0_47, %c0_48] : memref<1x128xf32, #tpu.memory_space<vmem>>, vector<1x128xf32>
      %cst_49 = arith.constant dense<0.000000e+00> : vector<16xf32>
      %88 = vector.multi_reduction <add>, %85, %cst_49 [1] : vector<16x128xf32> to vector<16xf32>
      %89 = vector.shape_cast %88 : vector<16xf32> to vector<16x1xf32>
      %cst_50 = arith.constant 3.125000e-02 : f32
      %90 = vector.broadcast %cst_50 : f32 to vector<16x1xf32>
      %91 = arith.mulf %89, %90 : vector<16x1xf32>
      %92 = vector.broadcast %91 : vector<16x1xf32> to vector<16x128xf32>
      %93 = arith.subf %85, %92 : vector<16x128xf32>
      %94 = vector.broadcast %45 : vector<1x128xf32> to vector<16x128xf32>
      %95 = arith.mulf %93, %94 : vector<16x128xf32>
      %96 = arith.mulf %95, %95 : vector<16x128xf32>
      %cst_51 = arith.constant dense<0.000000e+00> : vector<16xf32>
      %97 = vector.multi_reduction <add>, %96, %cst_51 [1] : vector<16x128xf32> to vector<16xf32>
      %98 = vector.shape_cast %97 : vector<16xf32> to vector<16x1xf32>
      %cst_52 = arith.constant 3.125000e-02 : f32
      %99 = vector.broadcast %cst_52 : f32 to vector<16x1xf32>
      %100 = arith.mulf %98, %99 : vector<16x1xf32>
      %cst_53 = arith.constant 9.99999974E-6 : f32
      %101 = vector.broadcast %cst_53 : f32 to vector<16x1xf32>
      %102 = arith.addf %100, %101 : vector<16x1xf32>
      %103 = math.rsqrt %102 : vector<16x1xf32>
      %104 = vector.broadcast %103 : vector<16x1xf32> to vector<16x128xf32>
      %105 = arith.mulf %95, %104 : vector<16x128xf32>
      %106 = vector.broadcast %86 : vector<1x128xf32> to vector<16x128xf32>
      %107 = arith.mulf %105, %106 : vector<16x128xf32>
      %108 = vector.broadcast %87 : vector<1x128xf32> to vector<16x128xf32>
      %109 = arith.addf %107, %108 : vector<16x128xf32>
      %110 = math.tanh %109 : vector<16x128xf32>
      %111 = arith.truncf %110 : vector<16x128xf32> to vector<16x128xbf16>
      %c0_54 = arith.constant 0 : index
      %c0_55 = arith.constant 0 : index
      %112 = vector.load %arg15[%c0_54, %c0_55] : memref<128x128xbf16, #tpu.memory_space<vmem>>, vector<128x128xbf16>
      %cst_56 = arith.constant dense<0.000000e+00> : vector<16x128xf32>
      %113 = tpu.matmul %111, %112, %cst_56 {dimension_numbers = #tpu.dot_dimension_numbers<[1], [0], [0], [1], [0, 0, 1, 1], [], []>} : vector<16x128xbf16>, vector<128x128xbf16>, vector<16x128xf32> -> vector<16x128xf32>
      %c0_57 = arith.constant 0 : index
      %c0_58 = arith.constant 0 : index
      %114 = vector.load %arg16[%c0_57, %c0_58] : memref<1x128xf32, #tpu.memory_space<vmem>>, vector<1x128xf32>
      %115 = vector.broadcast %114 : vector<1x128xf32> to vector<16x128xf32>
      %116 = arith.addf %113, %115 : vector<16x128xf32>
      %c0_59 = arith.constant 0 : index
      %c0_60 = arith.constant 0 : index
      %c0_61 = arith.constant 0 : index
      %117 = vector.load %arg17[%c0_59, %c0_60, %c0_61] : memref<1x16x128xf32, #tpu.memory_space<vmem>>, vector<1x16x128xf32>
      %118 = vector.shape_cast %117 : vector<1x16x128xf32> to vector<16x128xf32>
      %119 = vector.shape_cast %116 : vector<16x128xf32> to vector<1x16x128xf32>
      tpu.vector_store %arg17[%c0_59, %c0_60, %c0_61], %119 {strides = array<i32>} : memref<1x16x128xf32, #tpu.memory_space<vmem>>, vector<1x16x128xf32>,
    } else {
    }
    return
  }
  func.func @transform_0(%arg0: i32, %arg1: i32) -> (i32, i32, i32) {
    %c0_i32 = arith.constant 0 : i32
    %c0_i32_0 = arith.constant 0 : i32
    %c0_i32_1 = arith.constant 0 : i32
    return %arg0, %c0_i32, %c0_i32_0 : i32, i32, i32
  }
  func.func @transform_1(%arg0: i32, %arg1: i32) -> (i32, i32, i32) {
    %c0_i32 = arith.constant 0 : i32
    %c0_i32_0 = arith.constant 0 : i32
    return %arg0, %arg1, %c0_i32 : i32, i32, i32
  }
  func.func @transform_2(%arg0: i32, %arg1: i32) -> (i32, i32, i32) {
    %c0_i32 = arith.constant 0 : i32
    %c0_i32_0 = arith.constant 0 : i32
    return %arg0, %arg1, %c0_i32 : i32, i32, i32
  }
  func.func @transform_3(%arg0: i32, %arg1: i32) -> (i32, i32, i32) {
    %c0_i32 = arith.constant 0 : i32
    %c0_i32_0 = arith.constant 0 : i32
    return %arg0, %arg1, %c0_i32 : i32, i32, i32
  }
  func.func @transform_4(%arg0: i32, %arg1: i32) -> (i32, i32) {
    %c0_i32 = arith.constant 0 : i32
    %c0_i32_0 = arith.constant 0 : i32
    %c0_i32_1 = arith.constant 0 : i32
    return %c0_i32, %c0_i32_0 : i32, i32
  }
  func.func @transform_5(%arg0: i32, %arg1: i32) -> (i32, i32) {
    %c0_i32 = arith.constant 0 : i32
    %c0_i32_0 = arith.constant 0 : i32
    %c0_i32_1 = arith.constant 0 : i32
    return %c0_i32, %c0_i32_0 : i32, i32
  }
  func.func @transform_6(%arg0: i32, %arg1: i32) -> (i32, i32) {
    %c0_i32 = arith.constant 0 : i32
    %c0_i32_0 = arith.constant 0 : i32
    %c0_i32_1 = arith.constant 0 : i32
    return %c0_i32, %c0_i32_0 : i32, i32
  }
  func.func @transform_7(%arg0: i32, %arg1: i32) -> (i32, i32) {
    %c0_i32 = arith.constant 0 : i32
    %c0_i32_0 = arith.constant 0 : i32
    %c0_i32_1 = arith.constant 0 : i32
    return %c0_i32, %c0_i32_0 : i32, i32
  }
  func.func @transform_8(%arg0: i32, %arg1: i32) -> (i32, i32) {
    %c0_i32 = arith.constant 0 : i32
    %c0_i32_0 = arith.constant 0 : i32
    %c0_i32_1 = arith.constant 0 : i32
    return %c0_i32, %c0_i32_0 : i32, i32
  }
  func.func @transform_9(%arg0: i32, %arg1: i32) -> (i32, i32) {
    %c0_i32 = arith.constant 0 : i32
    %c0_i32_0 = arith.constant 0 : i32
    %c0_i32_1 = arith.constant 0 : i32
    return %c0_i32, %c0_i32_0 : i32, i32
  }
  func.func @transform_10(%arg0: i32, %arg1: i32) -> (i32, i32) {
    %c0_i32 = arith.constant 0 : i32
    %c0_i32_0 = arith.constant 0 : i32
    %c0_i32_1 = arith.constant 0 : i32
    return %c0_i32, %c0_i32_0 : i32, i32
  }
  func.func @transform_11(%arg0: i32, %arg1: i32) -> (i32, i32) {
    %c0_i32 = arith.constant 0 : i32
    %c0_i32_0 = arith.constant 0 : i32
    %c0_i32_1 = arith.constant 0 : i32
    return %c0_i32, %c0_i32_0 : i32, i32
  }
  func.func @transform_12(%arg0: i32, %arg1: i32) -> (i32, i32) {
    %c0_i32 = arith.constant 0 : i32
    %c0_i32_0 = arith.constant 0 : i32
    %c0_i32_1 = arith.constant 0 : i32
    return %c0_i32, %c0_i32_0 : i32, i32
  }
  func.func @transform_13(%arg0: i32, %arg1: i32) -> (i32, i32) {
    %c0_i32 = arith.constant 0 : i32
    %c0_i32_0 = arith.constant 0 : i32
    %c0_i32_1 = arith.constant 0 : i32
    return %c0_i32, %c0_i32_0 : i32, i32
  }
  func.func @transform_14(%arg0: i32, %arg1: i32) -> (i32, i32) {
    %c0_i32 = arith.constant 0 : i32
    %c0_i32_0 = arith.constant 0 : i32
    %c0_i32_1 = arith.constant 0 : i32
    return %c0_i32, %c0_i32_0 : i32, i32
  }
  func.func @transform_15(%arg0: i32, %arg1: i32) -> (i32, i32, i32) {
    %c0_i32 = arith.constant 0 : i32
    %c0_i32_0 = arith.constant 0 : i32
    %c0_i32_1 = arith.constant 0 : i32
    return %arg0, %c0_i32, %c0_i32_0 : i32, i32, i32
  }
}

</mosaic_0001>

<llo_original>
// kernel: tpu_custom_call.1
$region0: #{tpu_custom_call.1}
  #allocation0 [shape = 'u32[]', space=smem, size = 0x4, offset = 0x4, fixed_abs, tag = 'smem constant byte address 0x4 - core index']
  #allocation1 [shape = 'u32[144,128]{1,0:T(1,128)}', space=vmem, size = 0x12000, scoped, tag = 'internal scratch']
  #allocation2 [shape = 'f32[16,8]{1,0:T(8,128)}', space=vmem, size = 0x2000, scoped, tag = 'scratch operand']
  %s0 = inlined_call_operand.vmem [shape: f32[4,16,8], index: 0, kind: input, shape index: {}]
  %s1 = inlined_call_operand.vmem [shape: f32[4,32,1], index: 1, kind: input, shape index: {}]
  %s2 = inlined_call_operand.vmem [shape: s32[4,32,1], index: 2, kind: input, shape index: {}]
  %s3 = inlined_call_operand.vmem [shape: s32[4,32,1], index: 3, kind: input, shape index: {}]
  %s4 = inlined_call_operand.vmem [shape: bf16[8,128], index: 4, kind: input, shape index: {}]
  %s5 = inlined_call_operand.vmem [shape: bf16[8,128], index: 5, kind: input, shape index: {}]
  %s6 = inlined_call_operand.vmem [shape: f32[1,128], index: 6, kind: input, shape index: {}]
  %s7 = inlined_call_operand.vmem [shape: f32[1,128], index: 7, kind: input, shape index: {}]
  %s8 = inlined_call_operand.vmem [shape: f32[1,128], index: 8, kind: input, shape index: {}]
  %s9 = inlined_call_operand.vmem [shape: bf16[128,128], index: 9, kind: input, shape index: {}]
  %s10 = inlined_call_operand.vmem [shape: f32[1,128], index: 10, kind: input, shape index: {}]
  %s11 = inlined_call_operand.vmem [shape: f32[1,128], index: 11, kind: input, shape index: {}]
  %s12 = inlined_call_operand.vmem [shape: f32[1,128], index: 12, kind: input, shape index: {}]
  %s13 = inlined_call_operand.vmem [shape: bf16[128,128], index: 13, kind: input, shape index: {}]
  %s14 = inlined_call_operand.vmem [shape: f32[1,128], index: 14, kind: input, shape index: {}]
  %s15 = inlined_call_operand.hbm [shape: f32[4,16,128], index: 15, kind: output, shape index: {}]
  %s16 = sld [smem:[#allocation0]]
  $region101: #{tpu_custom_call.1} parent=0
    _
  %s18 = ssub.s32 1, %s16
  %s19 = scalar_select 0, %s18, %s16
  $region1: #{tpu_custom_call.1} parent=0
    #allocation3 [shape = 'u8[16384]{0}', space=vmem, size = 0x4000, scoped, tag = 'output window, operand 0']
    #allocation4 [shape = 's32[2]{0}', space=sflag, size = 0x8, scoped, tag = 'scoped memory for tpu_custom_call.1']
    %20 = vsyncpa [#allocation4], 0
    %s21 = scalar_lea.sflag [#allocation4], 1
    %22 = vsyncpa %s21, 0
    loop: start=0, step=1, limit=6
    $region2: #{tpu_custom_call.1} parent=1 // loop_pre_header
      _
    $region3: #{tpu_custom_call.1} parent=1 // loop_header
      %s24 = sphi 0, %s28
      %p25 = scmp.ge.s32.totalorder %s24, 6
      %s31 = sphi 0, %s43
      %s32 = sphi 0, %s39
      %s33 = sphi 0, %s31
      %s34 = sphi 0, %s32
      %s35 = sphi 0, %s33
      %s36 = sphi 0, %s34
      %s46 = sphi 0, %s48
      %s49 = sphi 0, %s46
      %s50 = sphi 0, %s49
      %s66 = sphi 0, %s50
      %s74 = sphi 0, %s76
      %s77 = sphi 0, %s74
      %s78 = sphi 0, %s77
      %s94 = sphi 0, %s78
      %s102 = sphi 0, %s104
      %s105 = sphi 0, %s102
      %s106 = sphi 0, %s105
      %s122 = sphi 0, %s106
      %s130 = sphi 0, %s132
      %s133 = sphi 0, %s130
      %s134 = sphi 0, %s133
      %s150 = sphi 0, %s134
      %s154 = sphi 0, %s154
      %s156 = sphi 0, %s154
      %s157 = sphi 0, %s156
      %s171 = sphi 0, %s157
      %s175 = sphi 0, %s175
      %s177 = sphi 0, %s175
      %s178 = sphi 0, %s177
      %s192 = sphi 0, %s178
      %s196 = sphi 0, %s196
      %s198 = sphi 0, %s196
      %s199 = sphi 0, %s198
      %s213 = sphi 0, %s199
      %s217 = sphi 0, %s217
      %s219 = sphi 0, %s217
      %s220 = sphi 0, %s219
      %s234 = sphi 0, %s220
      %s238 = sphi 0, %s238
      %s240 = sphi 0, %s238
      %s241 = sphi 0, %s240
      %s255 = sphi 0, %s241
      %s259 = sphi 0, %s259
      %s261 = sphi 0, %s259
      %s262 = sphi 0, %s261
      %s276 = sphi 0, %s262
      %s280 = sphi 0, %s280
      %s282 = sphi 0, %s280
      %s283 = sphi 0, %s282
      %s297 = sphi 0, %s283
      %s301 = sphi 0, %s301
      %s303 = sphi 0, %s301
      %s304 = sphi 0, %s303
      %s318 = sphi 0, %s304
      %s322 = sphi 0, %s322
      %s324 = sphi 0, %s322
      %s325 = sphi 0, %s324
      %s339 = sphi 0, %s325
      %s343 = sphi 0, %s343
      %s345 = sphi 0, %s343
      %s346 = sphi 0, %s345
      %s360 = sphi 0, %s346
      %s364 = sphi 0, %s364
      %s366 = sphi 0, %s364
      %s367 = sphi 0, %s366
      %s381 = sphi 0, %s367
      %s387 = sphi 0, %s389
      %s390 = sphi 0, %s387
      %s391 = sphi 0, %s390
      %s407 = sphi 0, %s391
    $region4: #{tpu_custom_call.1} parent=1 // loop_header_branch
      %27 = sbr.rel (%p25) target = $region8
    $region5: #{tpu_custom_call.1} parent=1 // loop_body
      %s29 = ssub.s32 %s24, 1
      %s30 = ssub.s32 %s24, 2
      %s37 = sadd.s32 1, %s32
      %p38 = scmp.ge.s32.totalorder %s37, 1
      %s39 = scalar_select %p38, 0, %s37
      %s40 = sadd.s32 1, %s31
      %s41 = scalar_select %p38, %s40, %s31
      %p42 = scmp.ge.s32.totalorder %s41, 4
      %s43 = scalar_select %p42, 0, %s41
      %s44 = ssub.s32 %s31, %s43
      %p45 = scmp.eq.s32.totalorder %s44, 0
      %s47 = sadd.s32 %s46, 1
      %s48 = scalar_select %p45, %s46, %s47
      %p51 = pneg %p45
      %p52 = scmp.eq.s32.totalorder %s24, 3
      %p53 = por %p51, %p52
      %p54 = scmp.ne.s32.totalorder %s46, %s49
      %p55 = scmp.eq.s32.totalorder %s24, 0
      %p56 = por %p54, %p55
      %p57 = scmp.ne.s32.totalorder %s46, %s49
      %p58 = scmp.eq.s32.totalorder %s29, 3
      %p59 = por %p57, %p58
      %p60 = scmp.ne.s32.totalorder %s49, %s50
      %p61 = scmp.eq.s32.totalorder %s29, 0
      %p62 = por %p60, %p61
      %p63 = scmp.ne.s32.totalorder %s49, %s50
      %p64 = scmp.eq.s32.totalorder %s30, 3
      %p65 = por %p63, %p64
      %p67 = scmp.ne.s32.totalorder %s50, %s66
      %p68 = scmp.eq.s32.totalorder %s30, 0
      %p69 = por %p67, %p68
      %s70 = ssub.s32 %s31, %s43
      %s71 = ssub.s32 %s32, %s39
      %s72 = sor.u32 %s70, %s71
      %p73 = scmp.eq.s32.totalorder %s72, 0
      %s75 = sadd.s32 %s74, 1
      %s76 = scalar_select %p73, %s74, %s75
      %p79 = pneg %p73
      %p80 = scmp.eq.s32.totalorder %s24, 3
      %p81 = por %p79, %p80
      %p82 = scmp.ne.s32.totalorder %s74, %s77
      %p83 = scmp.eq.s32.totalorder %s24, 0
      %p84 = por %p82, %p83
      %p85 = scmp.ne.s32.totalorder %s74, %s77
      %p86 = scmp.eq.s32.totalorder %s29, 3
      %p87 = por %p85, %p86
      %p88 = scmp.ne.s32.totalorder %s77, %s78
      %p89 = scmp.eq.s32.totalorder %s29, 0
      %p90 = por %p88, %p89
      %p91 = scmp.ne.s32.totalorder %s77, %s78
      %p92 = scmp.eq.s32.totalorder %s30, 3
      %p93 = por %p91, %p92
      %p95 = scmp.ne.s32.totalorder %s78, %s94
      %p96 = scmp.eq.s32.totalorder %s30, 0
      %p97 = por %p95, %p96
      %s98 = ssub.s32 %s31, %s43
      %s99 = ssub.s32 %s32, %s39
      %s100 = sor.u32 %s98, %s99
      %p101 = scmp.eq.s32.totalorder %s100, 0
      %s103 = sadd.s32 %s102, 1
      %s104 = scalar_select %p101, %s102, %s103
      %p107 = pneg %p101
      %p108 = scmp.eq.s32.totalorder %s24, 3
      %p109 = por %p107, %p108
      %p110 = scmp.ne.s32.totalorder %s102, %s105
      %p111 = scmp.eq.s32.totalorder %s24, 0
      %p112 = por %p110, %p111
      %p113 = scmp.ne.s32.totalorder %s102, %s105
      %p114 = scmp.eq.s32.totalorder %s29, 3
      %p115 = por %p113, %p114
      %p116 = scmp.ne.s32.totalorder %s105, %s106
      %p117 = scmp.eq.s32.totalorder %s29, 0
      %p118 = por %p116, %p117
      %p119 = scmp.ne.s32.totalorder %s105, %s106
      %p120 = scmp.eq.s32.totalorder %s30, 3
      %p121 = por %p119, %p120
      %p123 = scmp.ne.s32.totalorder %s106, %s122
      %p124 = scmp.eq.s32.totalorder %s30, 0
      %p125 = por %p123, %p124
      %s126 = ssub.s32 %s31, %s43
      %s127 = ssub.s32 %s32, %s39
      %s128 = sor.u32 %s126, %s127
      %p129 = scmp.eq.s32.totalorder %s128, 0
      %s131 = sadd.s32 %s130, 1
      %s132 = scalar_select %p129, %s130, %s131
      %p135 = pneg %p129
      %p136 = scmp.eq.s32.totalorder %s24, 3
      %p137 = por %p135, %p136
      %p138 = scmp.ne.s32.totalorder %s130, %s133
      %p139 = scmp.eq.s32.totalorder %s24, 0
      %p140 = por %p138, %p139
      %p141 = scmp.ne.s32.totalorder %s130, %s133
      %p142 = scmp.eq.s32.totalorder %s29, 3
      %p143 = por %p141, %p142
      %p144 = scmp.ne.s32.totalorder %s133, %s134
      %p145 = scmp.eq.s32.totalorder %s29, 0
      %p146 = por %p144, %p145
      %p147 = scmp.ne.s32.totalorder %s133, %s134
      %p148 = scmp.eq.s32.totalorder %s30, 3
      %p149 = por %p147, %p148
      %p151 = scmp.ne.s32.totalorder %s134, %s150
      %p152 = scmp.eq.s32.totalorder %s30, 0
      %p153 = por %p151, %p152
      %s155 = sadd.s32 %s154, 1
      %p158 = scmp.eq.s32.totalorder %s24, 3
      %p159 = scmp.ne.s32.totalorder %s154, %s156
      %p160 = scmp.eq.s32.totalorder %s24, 0
      %p161 = por %p159, %p160
      %p162 = scmp.ne.s32.totalorder %s154, %s156
      %p163 = scmp.eq.s32.totalorder %s29, 3
      %p164 = por %p162, %p163
      %p165 = scmp.ne.s32.totalorder %s156, %s157
      %p166 = scmp.eq.s32.totalorder %s29, 0
      %p167 = por %p165, %p166
      %p168 = scmp.ne.s32.totalorder %s156, %s157
      %p169 = scmp.eq.s32.totalorder %s30, 3
      %p170 = por %p168, %p169
      %p172 = scmp.ne.s32.totalorder %s157, %s171
      %p173 = scmp.eq.s32.totalorder %s30, 0
      %p174 = por %p172, %p173
      %s176 = sadd.s32 %s175, 1
      %p179 = scmp.eq.s32.totalorder %s24, 3
      %p180 = scmp.ne.s32.totalorder %s175, %s177
      %p181 = scmp.eq.s32.totalorder %s24, 0
      %p182 = por %p180, %p181
      %p183 = scmp.ne.s32.totalorder %s175, %s177
      %p184 = scmp.eq.s32.totalorder %s29, 3
      %p185 = por %p183, %p184
      %p186 = scmp.ne.s32.totalorder %s177, %s178
      %p187 = scmp.eq.s32.totalorder %s29, 0
      %p188 = por %p186, %p187
      %p189 = scmp.ne.s32.totalorder %s177, %s178
      %p190 = scmp.eq.s32.totalorder %s30, 3
      %p191 = por %p189, %p190
      %p193 = scmp.ne.s32.totalorder %s178, %s192
      %p194 = scmp.eq.s32.totalorder %s30, 0
      %p195 = por %p193, %p194
      %s197 = sadd.s32 %s196, 1
      %p200 = scmp.eq.s32.totalorder %s24, 3
      %p201 = scmp.ne.s32.totalorder %s196, %s198
      %p202 = scmp.eq.s32.totalorder %s24, 0
      %p203 = por %p201, %p202
      %p204 = scmp.ne.s32.totalorder %s196, %s198
      %p205 = scmp.eq.s32.totalorder %s29, 3
      %p206 = por %p204, %p205
      %p207 = scmp.ne.s32.totalorder %s198, %s199
      %p208 = scmp.eq.s32.totalorder %s29, 0
      %p209 = por %p207, %p208
      %p210 = scmp.ne.s32.totalorder %s198, %s199
      %p211 = scmp.eq.s32.totalorder %s30, 3
      %p212 = por %p210, %p211
      %p214 = scmp.ne.s32.totalorder %s199, %s213
      %p215 = scmp.eq.s32.totalorder %s30, 0
      %p216 = por %p214, %p215
      %s218 = sadd.s32 %s217, 1
      %p221 = scmp.eq.s32.totalorder %s24, 3
      %p222 = scmp.ne.s32.totalorder %s217, %s219
      %p223 = scmp.eq.s32.totalorder %s24, 0
      %p224 = por %p222, %p223
      %p225 = scmp.ne.s32.totalorder %s217, %s219
      %p226 = scmp.eq.s32.totalorder %s29, 3
      %p227 = por %p225, %p226
      %p228 = scmp.ne.s32.totalorder %s219, %s220
      %p229 = scmp.eq.s32.totalorder %s29, 0
      %p230 = por %p228, %p229
      %p231 = scmp.ne.s32.totalorder %s219, %s220
      %p232 = scmp.eq.s32.totalorder %s30, 3
      %p233 = por %p231, %p232
      %p235 = scmp.ne.s32.totalorder %s220, %s234
      %p236 = scmp.eq.s32.totalorder %s30, 0
      %p237 = por %p235, %p236
      %s239 = sadd.s32 %s238, 1
      %p242 = scmp.eq.s32.totalorder %s24, 3
      %p243 = scmp.ne.s32.totalorder %s238, %s240
      %p244 = scmp.eq.s32.totalorder %s24, 0
      %p245 = por %p243, %p244
      %p246 = scmp.ne.s32.totalorder %s238, %s240
      %p247 = scmp.eq.s32.totalorder %s29, 3
      %p248 = por %p246, %p247
      %p249 = scmp.ne.s32.totalorder %s240, %s241
      %p250 = scmp.eq.s32.totalorder %s29, 0
      %p251 = por %p249, %p250
      %p252 = scmp.ne.s32.totalorder %s240, %s241
      %p253 = scmp.eq.s32.totalorder %s30, 3
      %p254 = por %p252, %p253
      %p256 = scmp.ne.s32.totalorder %s241, %s255
      %p257 = scmp.eq.s32.totalorder %s30, 0
      %p258 = por %p256, %p257
      %s260 = sadd.s32 %s259, 1
      %p263 = scmp.eq.s32.totalorder %s24, 3
      %p264 = scmp.ne.s32.totalorder %s259, %s261
      %p265 = scmp.eq.s32.totalorder %s24, 0
      %p266 = por %p264, %p265
      %p267 = scmp.ne.s32.totalorder %s259, %s261
      %p268 = scmp.eq.s32.totalorder %s29, 3
      %p269 = por %p267, %p268
      %p270 = scmp.ne.s32.totalorder %s261, %s262
      %p271 = scmp.eq.s32.totalorder %s29, 0
      %p272 = por %p270, %p271
      %p273 = scmp.ne.s32.totalorder %s261, %s262
      %p274 = scmp.eq.s32.totalorder %s30, 3
      %p275 = por %p273, %p274
      %p277 = scmp.ne.s32.totalorder %s262, %s276
      %p278 = scmp.eq.s32.totalorder %s30, 0
      %p279 = por %p277, %p278
      %s281 = sadd.s32 %s280, 1
      %p284 = scmp.eq.s32.totalorder %s24, 3
      %p285 = scmp.ne.s32.totalorder %s280, %s282
      %p286 = scmp.eq.s32.totalorder %s24, 0
      %p287 = por %p285, %p286
      %p288 = scmp.ne.s32.totalorder %s280, %s282
      %p289 = scmp.eq.s32.totalorder %s29, 3
      %p290 = por %p288, %p289
      %p291 = scmp.ne.s32.totalorder %s282, %s283
      %p292 = scmp.eq.s32.totalorder %s29, 0
      %p293 = por %p291, %p292
      %p294 = scmp.ne.s32.totalorder %s282, %s283
      %p295 = scmp.eq.s32.totalorder %s30, 3
      %p296 = por %p294, %p295
      %p298 = scmp.ne.s32.totalorder %s283, %s297
      %p299 = scmp.eq.s32.totalorder %s30, 0
      %p300 = por %p298, %p299
      %s302 = sadd.s32 %s301, 1
      %p305 = scmp.eq.s32.totalorder %s24, 3
      %p306 = scmp.ne.s32.totalorder %s301, %s303
      %p307 = scmp.eq.s32.totalorder %s24, 0
      %p308 = por %p306, %p307
      %p309 = scmp.ne.s32.totalorder %s301, %s303
      %p310 = scmp.eq.s32.totalorder %s29, 3
      %p311 = por %p309, %p310
      %p312 = scmp.ne.s32.totalorder %s303, %s304
      %p313 = scmp.eq.s32.totalorder %s29, 0
      %p314 = por %p312, %p313
      %p315 = scmp.ne.s32.totalorder %s303, %s304
      %p316 = scmp.eq.s32.totalorder %s30, 3
      %p317 = por %p315, %p316
      %p319 = scmp.ne.s32.totalorder %s304, %s318
      %p320 = scmp.eq.s32.totalorder %s30, 0
      %p321 = por %p319, %p320
      %s323 = sadd.s32 %s322, 1
      %p326 = scmp.eq.s32.totalorder %s24, 3
      %p327 = scmp.ne.s32.totalorder %s322, %s324
      %p328 = scmp.eq.s32.totalorder %s24, 0
      %p329 = por %p327, %p328
      %p330 = scmp.ne.s32.totalorder %s322, %s324
      %p331 = scmp.eq.s32.totalorder %s29, 3
      %p332 = por %p330, %p331
      %p333 = scmp.ne.s32.totalorder %s324, %s325
      %p334 = scmp.eq.s32.totalorder %s29, 0
      %p335 = por %p333, %p334
      %p336 = scmp.ne.s32.totalorder %s324, %s325
      %p337 = scmp.eq.s32.totalorder %s30, 3
      %p338 = por %p336, %p337
      %p340 = scmp.ne.s32.totalorder %s325, %s339
      %p341 = scmp.eq.s32.totalorder %s30, 0
      %p342 = por %p340, %p341
      %s344 = sadd.s32 %s343, 1
      %p347 = scmp.eq.s32.totalorder %s24, 3
      %p348 = scmp.ne.s32.totalorder %s343, %s345
      %p349 = scmp.eq.s32.totalorder %s24, 0
      %p350 = por %p348, %p349
      %p351 = scmp.ne.s32.totalorder %s343, %s345
      %p352 = scmp.eq.s32.totalorder %s29, 3
      %p353 = por %p351, %p352
      %p354 = scmp.ne.s32.totalorder %s345, %s346
      %p355 = scmp.eq.s32.totalorder %s29, 0
      %p356 = por %p354, %p355
      %p357 = scmp.ne.s32.totalorder %s345, %s346
      %p358 = scmp.eq.s32.totalorder %s30, 3
      %p359 = por %p357, %p358
      %p361 = scmp.ne.s32.totalorder %s346, %s360
      %p362 = scmp.eq.s32.totalorder %s30, 0
      %p363 = por %p361, %p362
      %s365 = sadd.s32 %s364, 1
      %p368 = scmp.eq.s32.totalorder %s24, 3
      %p369 = scmp.ne.s32.totalorder %s364, %s366
      %p370 = scmp.eq.s32.totalorder %s24, 0
      %p371 = por %p369, %p370
      %p372 = scmp.ne.s32.totalorder %s364, %s366
      %p373 = scmp.eq.s32.totalorder %s29, 3
      %p374 = por %p372, %p373
      %p375 = scmp.ne.s32.totalorder %s366, %s367
      %p376 = scmp.eq.s32.totalorder %s29, 0
      %p377 = por %p375, %p376
      %p378 = scmp.ne.s32.totalorder %s366, %s367
      %p379 = scmp.eq.s32.totalorder %s30, 3
      %p380 = por %p378, %p379
      %p382 = scmp.ne.s32.totalorder %s367, %s381
      %p383 = scmp.eq.s32.totalorder %s30, 0
      %p384 = por %p382, %p383
      %s385 = ssub.s32 %s31, %s43
      %p386 = scmp.eq.s32.totalorder %s385, 0
      %s388 = sadd.s32 %s387, 1
      %s389 = scalar_select %p386, %s387, %s388
      %p392 = pneg %p386
      %p393 = scmp.eq.s32.totalorder %s24, 3
      %p394 = por %p392, %p393
      %p395 = scmp.ne.s32.totalorder %s387, %s390
      %p396 = scmp.eq.s32.totalorder %s24, 0
      %p397 = por %p395, %p396
      %p398 = scmp.ne.s32.totalorder %s387, %s390
      %p399 = scmp.eq.s32.totalorder %s29, 3
      %p400 = por %p398, %p399
      %p401 = scmp.ne.s32.totalorder %s390, %s391
      %p402 = scmp.eq.s32.totalorder %s29, 0
      %p403 = por %p401, %p402
      %p404 = scmp.ne.s32.totalorder %s390, %s391
      %p405 = scmp.eq.s32.totalorder %s30, 3
      %p406 = por %p404, %p405
      %p408 = scmp.ne.s32.totalorder %s391, %s407
      %p409 = scmp.eq.s32.totalorder %s30, 0
      %p410 = por %p408, %p409
      %p411 = scmp.le.s32.totalorder 1, %s24
      %p412 = scmp.lt.s32.totalorder %s24, 5
      %p413 = pnand %p411, %p412
      %p414 = pneg %p413
      // Predicated region
      $region9: #{tpu_custom_call.1} parent=5 // pred_check
        _
      $region10: #{tpu_custom_call.1} parent=5 // pred_check_branch
        %416 = sbr.rel (%p413) target = $region12
      $region11: #{tpu_custom_call.1} parent=5 // pred_region
        %s417 = ssub.s32 %s24, 1
        // Predicated region
        $region13: #{tpu_custom_call.1} parent=11 // pred_check
          %p418 = pneg %p167
        $region14: #{tpu_custom_call.1} parent=11 // pred_check_branch
          %420 = sbr.rel (%p418) target = $region16
        $region15: #{tpu_custom_call.1} parent=11 // pred_region
          _
        $region16: #{tpu_custom_call.1} parent=11 // pred_fallthru
          _
        // Predicated region
        $region17: #{tpu_custom_call.1} parent=11 // pred_check
          %p421 = pneg %p188
        $region18: #{tpu_custom_call.1} parent=11 // pred_check_branch
          %423 = sbr.rel (%p421) target = $region20
        $region19: #{tpu_custom_call.1} parent=11 // pred_region
          _
        $region20: #{tpu_custom_call.1} parent=11 // pred_fallthru
          _
        // Predicated region
        $region21: #{tpu_custom_call.1} parent=11 // pred_check
          %p424 = pneg %p209
        $region22: #{tpu_custom_call.1} parent=11 // pred_check_branch
          %426 = sbr.rel (%p424) target = $region24
        $region23: #{tpu_custom_call.1} parent=11 // pred_region
          _
        $region24: #{tpu_custom_call.1} parent=11 // pred_fallthru
          _
        // Predicated region
        $region25: #{tpu_custom_call.1} parent=11 // pred_check
          %p427 = pneg %p230
        $region26: #{tpu_custom_call.1} parent=11 // pred_check_branch
          %429 = sbr.rel (%p427) target = $region28
        $region27: #{tpu_custom_call.1} parent=11 // pred_region
          _
        $region28: #{tpu_custom_call.1} parent=11 // pred_fallthru
          _
        // Predicated region
        $region29: #{tpu_custom_call.1} parent=11 // pred_check
          %p430 = pneg %p251
        $region30: #{tpu_custom_call.1} parent=11 // pred_check_branch
          %432 = sbr.rel (%p430) target = $region32
        $region31: #{tpu_custom_call.1} parent=11 // pred_region
          _
        $region32: #{tpu_custom_call.1} parent=11 // pred_fallthru
          _
        // Predicated region
        $region33: #{tpu_custom_call.1} parent=11 // pred_check
          %p433 = pneg %p272
        $region34: #{tpu_custom_call.1} parent=11 // pred_check_branch
          %435 = sbr.rel (%p433) target = $region36
        $region35: #{tpu_custom_call.1} parent=11 // pred_region
          _
        $region36: #{tpu_custom_call.1} parent=11 // pred_fallthru
          _
        // Predicated region
        $region37: #{tpu_custom_call.1} parent=11 // pred_check
          %p436 = pneg %p293
        $region38: #{tpu_custom_call.1} parent=11 // pred_check_branch
          %438 = sbr.rel (%p436) target = $region40
        $region39: #{tpu_custom_call.1} parent=11 // pred_region
          _
        $region40: #{tpu_custom_call.1} parent=11 // pred_fallthru
          _
        // Predicated region
        $region41: #{tpu_custom_call.1} parent=11 // pred_check
          %p439 = pneg %p314
        $region42: #{tpu_custom_call.1} parent=11 // pred_check_branch
          %441 = sbr.rel (%p439) target = $region44
        $region43: #{tpu_custom_call.1} parent=11 // pred_region
          _
        $region44: #{tpu_custom_call.1} parent=11 // pred_fallthru
          _
        // Predicated region
        $region45: #{tpu_custom_call.1} parent=11 // pred_check
          %p442 = pneg %p335
        $region46: #{tpu_custom_call.1} parent=11 // pred_check_branch
          %444 = sbr.rel (%p442) target = $region48
        $region47: #{tpu_custom_call.1} parent=11 // pred_region
          _
        $region48: #{tpu_custom_call.1} parent=11 // pred_fallthru
          _
        // Predicated region
        $region49: #{tpu_custom_call.1} parent=11 // pred_check
          %p445 = pneg %p356
        $region50: #{tpu_custom_call.1} parent=11 // pred_check_branch
          %447 = sbr.rel (%p445) target = $region52
        $region51: #{tpu_custom_call.1} parent=11 // pred_region
          _
        $region52: #{tpu_custom_call.1} parent=11 // pred_fallthru
          _
        // Predicated region
        $region53: #{tpu_custom_call.1} parent=11 // pred_check
          %p448 = pneg %p377
        $region54: #{tpu_custom_call.1} parent=11 // pred_check_branch
          %450 = sbr.rel (%p448) target = $region56
        $region55: #{tpu_custom_call.1} parent=11 // pred_region
          _
        $region56: #{tpu_custom_call.1} parent=11 // pred_fallthru
          _
      $region12: #{tpu_custom_call.1} parent=5 // pred_fallthru
        _
      %p451 = scmp.lt.s32.totalorder %s24, 4
      // Predicated region
      $region57: #{tpu_custom_call.1} parent=5 // pred_check
        %p452 = pneg %p451
      $region58: #{tpu_custom_call.1} parent=5 // pred_check_branch
        %454 = sbr.rel (%p452) target = $region60
      $region59: #{tpu_custom_call.1} parent=5 // pred_region
        // Predicated region
        $region61: #{tpu_custom_call.1} parent=59 // pred_check
          %p455 = pneg %p56
        $region62: #{tpu_custom_call.1} parent=59 // pred_check_branch
          %457 = sbr.rel (%p455) target = $region64
        $region63: #{tpu_custom_call.1} parent=59 // pred_region
          %p458 = scmp.lt.s32.totalorder %s31, 3
          %s459 = scalar_select %p458, %s31, 3
          %s460 = smul.addr %s459, 2
          %s461 = smul.addr %s460, 8
          %s462 = scalar_lea.vmem %s0, %s461
        $region64: #{tpu_custom_call.1} parent=59 // pred_fallthru
          _
        // Predicated region
        $region65: #{tpu_custom_call.1} parent=59 // pred_check
          %p463 = pneg %p84
        $region66: #{tpu_custom_call.1} parent=59 // pred_check_branch
          %465 = sbr.rel (%p463) target = $region68
        $region67: #{tpu_custom_call.1} parent=59 // pred_region
          %s466 = smul.u32 4, %s32
          %p467 = scmp.lt.s32.totalorder %s31, 3
          %s468 = scalar_select %p467, %s31, 3
          %p469 = scmp.lt.s32.totalorder %s466, 3
          %s470 = scalar_select %p469, %s466, 3
          %s471 = smul.addr %s468, 4
          %s472 = sadd.s32 %s470, %s471
          %s473 = smul.addr %s472, 8
          %s474 = scalar_lea.vmem %s1, %s473
          %s475 = smul.u32 4, %s32
        $region68: #{tpu_custom_call.1} parent=59 // pred_fallthru
          _
        // Predicated region
        $region69: #{tpu_custom_call.1} parent=59 // pred_check
          %p476 = pneg %p112
        $region70: #{tpu_custom_call.1} parent=59 // pred_check_branch
          %478 = sbr.rel (%p476) target = $region72
        $region71: #{tpu_custom_call.1} parent=59 // pred_region
          %s479 = smul.u32 4, %s32
          %p480 = scmp.lt.s32.totalorder %s31, 3
          %s481 = scalar_select %p480, %s31, 3
          %p482 = scmp.lt.s32.totalorder %s479, 3
          %s483 = scalar_select %p482, %s479, 3
          %s484 = smul.addr %s481, 4
          %s485 = sadd.s32 %s483, %s484
          %s486 = smul.addr %s485, 8
          %s487 = scalar_lea.vmem %s2, %s486
          %s488 = smul.u32 4, %s32
        $region72: #{tpu_custom_call.1} parent=59 // pred_fallthru
          _
        // Predicated region
        $region73: #{tpu_custom_call.1} parent=59 // pred_check
          %p489 = pneg %p140
        $region74: #{tpu_custom_call.1} parent=59 // pred_check_branch
          %491 = sbr.rel (%p489) target = $region76
        $region75: #{tpu_custom_call.1} parent=59 // pred_region
          %s492 = smul.u32 4, %s32
          %p493 = scmp.lt.s32.totalorder %s31, 3
          %s494 = scalar_select %p493, %s31, 3
          %p495 = scmp.lt.s32.totalorder %s492, 3
          %s496 = scalar_select %p495, %s492, 3
          %s497 = smul.addr %s494, 4
          %s498 = sadd.s32 %s496, %s497
          %s499 = smul.addr %s498, 8
          %s500 = scalar_lea.vmem %s3, %s499
          %s501 = smul.u32 4, %s32
        $region76: #{tpu_custom_call.1} parent=59 // pred_fallthru
          _
      $region60: #{tpu_custom_call.1} parent=5 // pred_fallthru
        _
      %p502 = scmp.le.s32.totalorder 1, %s24
      %p503 = scmp.lt.s32.totalorder %s24, 5
      %p504 = pnand %p502, %p503
      %p505 = pneg %p504
      // Predicated region
      $region77: #{tpu_custom_call.1} parent=5 // pred_check
        _
      $region78: #{tpu_custom_call.1} parent=5 // pred_check_branch
        %507 = sbr.rel (%p504) target = $region80
      $region79: #{tpu_custom_call.1} parent=5 // pred_region
        %s508 = ssub.s32 %s24, 1
        %p509 = scmp.lt.s32.totalorder %s33, 3
        %s510 = scalar_select %p509, %s33, 3
        %s511 = smul.addr %s510, 2
        %s512 = smul.addr %s511, 8
        %s513 = scalar_lea.vmem %s0, %s512
        %p514 = pneg %p62
        %p515 = pneg %p59
        %s516 = smul.u32 4, %s34
        %p517 = scmp.lt.s32.totalorder %s33, 3
        %s518 = scalar_select %p517, %s33, 3
        %p519 = scmp.lt.s32.totalorder %s516, 3
        %s520 = scalar_select %p519, %s516, 3
        %s521 = smul.addr %s518, 4
        %s522 = sadd.s32 %s520, %s521
        %s523 = smul.addr %s522, 8
        %s524 = scalar_lea.vmem %s1, %s523
        %p525 = pneg %p90
        %p526 = pneg %p87
        %s527 = smul.u32 4, %s34
        %p528 = scmp.lt.s32.totalorder %s33, 3
        %s529 = scalar_select %p528, %s33, 3
        %p530 = scmp.lt.s32.totalorder %s527, 3
        %s531 = scalar_select %p530, %s527, 3
        %s532 = smul.addr %s529, 4
        %s533 = sadd.s32 %s531, %s532
        %s534 = smul.addr %s533, 8
        %s535 = scalar_lea.vmem %s2, %s534
        %p536 = pneg %p118
        %p537 = pneg %p115
        %s538 = smul.u32 4, %s34
        %p539 = scmp.lt.s32.totalorder %s33, 3
        %s540 = scalar_select %p539, %s33, 3
        %p541 = scmp.lt.s32.totalorder %s538, 3
        %s542 = scalar_select %p541, %s538, 3
        %s543 = smul.addr %s540, 4
        %s544 = sadd.s32 %s542, %s543
        %s545 = smul.addr %s544, 8
        %s546 = scalar_lea.vmem %s3, %s545
        %p547 = pneg %p146
        %p548 = pneg %p143
        %p549 = pneg %p167
        %p550 = pneg %p164
        %p551 = pneg %p188
        %p552 = pneg %p185
        %p553 = pneg %p209
        %p554 = pneg %p206
        %p555 = pneg %p230
        %p556 = pneg %p227
        %p557 = pneg %p251
        %p558 = pneg %p248
        %p559 = pneg %p272
        %p560 = pneg %p269
        %p561 = pneg %p293
        %p562 = pneg %p290
        %p563 = pneg %p314
        %p564 = pneg %p311
        %p565 = pneg %p335
        %p566 = pneg %p332
        %p567 = pneg %p356
        %p568 = pneg %p353
        %p569 = pneg %p377
        %p570 = pneg %p374
        %p571 = pneg %p403
        %p572 = pneg %p400
        %s573 = sand.u32 %s390, 1
        %s574 = scalar_lea.sflag [#allocation4], %s573
        %s575 = sand.u32 %s390, 1
        %s576 = smul.addr %s575, 16
        %s577 = scalar_lea.vmem [#allocation3], %s576
        %p578 = scmp.lt.s32.totalorder %s33, 3
        %s579 = scalar_select %p578, %s33, 3
        %s580 = smul.addr %s579, 2
        %s581 = smul.addr %s580, 8
        %s582 = scalar_lea.vmem %s0, %s581
        %s583 = smul.u32 4, %s34
        %p584 = scmp.lt.s32.totalorder %s33, 3
        %s585 = scalar_select %p584, %s33, 3
        %p586 = scmp.lt.s32.totalorder %s583, 3
        %s587 = scalar_select %p586, %s583, 3
        %s588 = smul.addr %s585, 4
        %s589 = sadd.s32 %s587, %s588
        %s590 = smul.addr %s589, 8
        %s591 = scalar_lea.vmem %s1, %s590
        %s592 = smul.u32 4, %s34
        %s593 = smul.u32 4, %s34
        %p594 = scmp.lt.s32.totalorder %s33, 3
        %s595 = scalar_select %p594, %s33, 3
        %p596 = scmp.lt.s32.totalorder %s593, 3
        %s597 = scalar_select %p596, %s593, 3
        %s598 = smul.addr %s595, 4
        %s599 = sadd.s32 %s597, %s598
        %s600 = smul.addr %s599, 8
        %s601 = scalar_lea.vmem %s2, %s600
        %s602 = smul.u32 4, %s34
        %s603 = smul.u32 4, %s34
        %p604 = scmp.lt.s32.totalorder %s33, 3
        %s605 = scalar_select %p604, %s33, 3
        %p606 = scmp.lt.s32.totalorder %s603, 3
        %s607 = scalar_select %p606, %s603, 3
        %s608 = smul.addr %s605, 4
        %s609 = sadd.s32 %s607, %s608
        %s610 = smul.addr %s609, 8
        %s611 = scalar_lea.vmem %s3, %s610
        %s612 = smul.u32 4, %s34
        %p614 = scmp.eq.s32.totalorder %s34, 0
        // Predicated region
        $region81: #{tpu_custom_call.1} parent=79 // pred_check
          %p615 = pneg %p614
        $region82: #{tpu_custom_call.1} parent=79 // pred_check_branch
          %617 = sbr.rel (%p615) target = $region84
        $region83: #{tpu_custom_call.1} parent=79 // pred_region
          %vm618 = vcmask 64512
          %619 = vst.msk [vmem:[#allocation2] sm:$0xff] %vm618, 0.0
          %620 = vst.msk [vmem:[#allocation2 + $0x8] sm:$0xff] %vm618, 0.0
        $region84: #{tpu_custom_call.1} parent=79 // pred_fallthru
          _
        %v621 = vld [vmem:[%s582] sm:$0xff]
        %v622 = vld [vmem:[%s582 + $0x8] sm:$0xff]
        %v623 = vld [vmem:[%s591] sm:$0xff]
        %v624 = vld [vmem:[%s591 + $0x8] sm:$0xff]
        %v625 = vld [vmem:[%s591 + $0x10] sm:$0xff]
        %v626 = vld [vmem:[%s591 + $0x18] sm:$0xff]
        %v627 = vld [vmem:[%s601] sm:$0xff]
        %v628 = vld [vmem:[%s601 + $0x8] sm:$0xff]
        %v629 = vld [vmem:[%s601 + $0x10] sm:$0xff]
        %v630 = vld [vmem:[%s601 + $0x18] sm:$0xff]
        %v631 = vld [vmem:[%s611] sm:$0xff]
        %v632 = vld [vmem:[%s611 + $0x8] sm:$0xff]
        %v633 = vld [vmem:[%s611 + $0x10] sm:$0xff]
        %v634 = vld [vmem:[%s611 + $0x18] sm:$0xff]
        %v635 = vlaneseq
        %v636 = vand.u32 %v635, 127
        %637 = vset.pattern.permute.xlu0 0
        %638 = vperm.xlu0 %637, %v627
        %v639 = vpop.permute.xlu0 %638
        %640 = vset.pattern.permute.xlu0 0
        %641 = vperm.xlu0 %640, %v628
        %v642 = vpop.permute.xlu0 %641
        %643 = vset.pattern.permute.xlu0 0
        %644 = vperm.xlu0 %643, %v629
        %v645 = vpop.permute.xlu0 %644
        %646 = vset.pattern.permute.xlu0 0
        %647 = vperm.xlu0 %646, %v630
        %v648 = vpop.permute.xlu0 %647
        %vm649 = vcmp.eq.s32.totalorder %v639, %v636
        %vm650 = vcmp.eq.s32.totalorder %v642, %v636
        %vm651 = vcmp.eq.s32.totalorder %v645, %v636
        %vm652 = vcmp.eq.s32.totalorder %v648, %v636
        %v653 = vsel %vm649, 1, 0
        %v654 = vsel %vm650, 1, 0
        %v655 = vsel %vm651, 1, 0
        %v656 = vsel %vm652, 1, 0
        %v657 = vcvt.s32.f32 %v653
        %v658 = vcvt.s32.f32 %v654
        %v659 = vcvt.s32.f32 %v655
        %v660 = vcvt.s32.f32 %v656
        %v661 = vpack.c.bf16 %v658, %v657
        %v662 = vpack.c.bf16 %v660, %v659
        %663 = vset.pattern.permute.xlu0 0
        %664 = vperm.xlu0 %663, %v631
        %v665 = vpop.permute.xlu0 %664
        %666 = vset.pattern.permute.xlu0 0
        %667 = vperm.xlu0 %666, %v632
        %v668 = vpop.permute.xlu0 %667
        %669 = vset.pattern.permute.xlu0 0
        %670 = vperm.xlu0 %669, %v633
        %v671 = vpop.permute.xlu0 %670
        %672 = vset.pattern.permute.xlu0 0
        %673 = vperm.xlu0 %672, %v634
        %v674 = vpop.permute.xlu0 %673
        %vm675 = vcmp.eq.s32.totalorder %v665, %v636
        %vm676 = vcmp.eq.s32.totalorder %v668, %v636
        %vm677 = vcmp.eq.s32.totalorder %v671, %v636
        %vm678 = vcmp.eq.s32.totalorder %v674, %v636
        %v679 = vsel %vm675, 1, 0
        %v680 = vsel %vm676, 1, 0
        %v681 = vsel %vm677, 1, 0
        %v682 = vsel %vm678, 1, 0
        %v683 = vcvt.s32.f32 %v679
        %v684 = vcvt.s32.f32 %v680
        %v685 = vcvt.s32.f32 %v681
        %v686 = vcvt.s32.f32 %v682
        %v687 = vpack.c.bf16 %v684, %v683
        %v688 = vpack.c.bf16 %v686, %v685
        %v689 = vpack.c.bf16 %v622, %v621
        %vm690 = vcmask 130048
        %v692 = vsel %vm690, %v661, 0
        %v695 = vsel %vm690, %v662, 0
        %697 = vmatprep.subr.bf16.mxu0 0
        %698 = vmatpush1.bf16.msra.mxu0 0
        %699 = vmatprep.subr.bf16.mxu0 0
        %700 = vmatpush1.bf16.msra.mxu0 0
        %701 = vmatprep.subr.bf16.mxu0 0
        %702 = vmatpush1.bf16.msra.mxu0 0
        %703 = vmatprep.subr.bf16.mxu0 0
        %704 = vmatpush1.bf16.msra.mxu0 0
        %705 = vmatprep.subr.bf16.mxu0 0
        %706 = vmatpush1.bf16.msra.mxu0 0
        %707 = vmatprep.subr.bf16.mxu0 0
        %708 = vmatpush1.bf16.msra.mxu0 0
        %709 = vmatprep.subr.bf16.mxu0 0
        %710 = vmatpush1.bf16.msra.mxu0 0
        %711 = vmatprep.subr.bf16.mxu0 0
        %712 = vmatpush1.bf16.msra.mxu0 %v689
        %713 = vmatprep.subr.bf16.mxu0 0
        %714 = vmatpush2.bf16.msra.mxu0 0
        %715 = vmatprep.subr.bf16.mxu0 0
        %716 = vmatpush2.bf16.msra.mxu0 0
        %717 = vmatprep.subr.bf16.mxu0 0
        %718 = vmatpush2.bf16.msra.mxu0 0
        %719 = vmatprep.subr.bf16.mxu0 0
        %720 = vmatpush2.bf16.msra.mxu0 0
        %721 = vmatprep.subr.bf16.mxu0 0
        %722 = vmatpush2.bf16.msra.mxu0 0
        %723 = vmatprep.subr.bf16.mxu0 0
        %724 = vmatpush2.bf16.msra.mxu0 0
        %725 = vmatprep.subr.bf16.mxu0 0
        %726 = vmatpush2.bf16.msra.mxu0 0
        %727 = vmatprep.subr.bf16.mxu0 0
        %728 = vmatpush2.bf16.msra.mxu0 0
        %729 = vmatprep.mubr.bf16.mxu0 0
        %730 = vmatmul.mubr.bf16.gmra.mxu0 %v692
        %v731 = vpop.f32.mrf.mxu0
        %v732 = vadd.f32 0.0, %v731
        %v733 = vpop.f32.mrf.mxu0
        %v734 = vpop.f32.mrf.mxu0
        %v735 = vadd.f32 0.0, %v734
        %v736 = vpop.f32.mrf.mxu0
        %737 = vmatprep.mubr.bf16.mxu0 0
        %738 = vmatmul.mubr.bf16.gmra.mxu0 %v695
        %v739 = vpop.f32.mrf.mxu0
        %v740 = vadd.f32 0.0, %v739
        %v741 = vpop.f32.mrf.mxu0
        %v742 = vpop.f32.mrf.mxu0
        %v743 = vadd.f32 0.0, %v742
        %v744 = vpop.f32.mrf.mxu0
        %745 = vdwg.mxu0
        %747 = vset.pattern.permute.xlu0 0
        %748 = vperm.xlu0 %747, %v623
        %v749 = vpop.permute.xlu0 %748
        %752 = vset.pattern.permute.xlu0 0
        %753 = vperm.xlu0 %752, %v624
        %v754 = vpop.permute.xlu0 %753
        %757 = vset.pattern.permute.xlu0 0
        %758 = vperm.xlu0 %757, %v625
        %v759 = vpop.permute.xlu0 %758
        %762 = vset.pattern.permute.xlu0 0
        %763 = vperm.xlu0 %762, %v626
        %v764 = vpop.permute.xlu0 %763
        %v766 = vmul.f32 %v732, %v749
        %v767 = vmul.f32 %v735, %v754
        %v768 = vmul.f32 %v740, %v759
        %v769 = vmul.f32 %v743, %v764
        %v771 = vsel %vm690, %v687, 0
        %v774 = vsel %vm690, %v688, 0
        %776 = vmatprep.subr.bf16.mxu0 0
        %777 = vmatpush1.bf16.msra.mxu0 0
        %778 = vmatprep.subr.bf16.mxu0 0
        %779 = vmatpush1.bf16.msra.mxu0 0
        %780 = vmatprep.subr.bf16.mxu0 0
        %781 = vmatpush1.bf16.msra.mxu0 0
        %782 = vmatprep.subr.bf16.mxu0 0
        %783 = vmatpush1.bf16.msra.mxu0 0
        %784 = vmatprep.subr.bf16.mxu0 0
        %785 = vmatpush1.bf16.msra.mxu0 0
        %786 = vmatprep.subr.bf16.mxu0 0
        %787 = vmatpush1.bf16.msra.mxu0 0
        %788 = vmatprep.subr.bf16.mxu0 0
        %789 = vmatpush1.bf16.msra.mxu0 0
        %790 = vmatprep.subr.bf16.mxu0 0
        %791 = vmatpush1.bf16.msra.mxu0 %v689
        %792 = vmatprep.subr.bf16.mxu0 0
        %793 = vmatpush2.bf16.msra.mxu0 0
        %794 = vmatprep.subr.bf16.mxu0 0
        %795 = vmatpush2.bf16.msra.mxu0 0
        %796 = vmatprep.subr.bf16.mxu0 0
        %797 = vmatpush2.bf16.msra.mxu0 0
        %798 = vmatprep.subr.bf16.mxu0 0
        %799 = vmatpush2.bf16.msra.mxu0 0
        %800 = vmatprep.subr.bf16.mxu0 0
        %801 = vmatpush2.bf16.msra.mxu0 0
        %802 = vmatprep.subr.bf16.mxu0 0
        %803 = vmatpush2.bf16.msra.mxu0 0
        %804 = vmatprep.subr.bf16.mxu0 0
        %805 = vmatpush2.bf16.msra.mxu0 0
        %806 = vmatprep.subr.bf16.mxu0 0
        %807 = vmatpush2.bf16.msra.mxu0 0
        %808 = vmatprep.mubr.bf16.mxu0 0
        %809 = vmatmul.mubr.bf16.gmra.mxu0 %v771
        %v810 = vpop.f32.mrf.mxu0
        %v811 = vadd.f32 0.0, %v810
        %v812 = vpop.f32.mrf.mxu0
        %v813 = vpop.f32.mrf.mxu0
        %v814 = vadd.f32 0.0, %v813
        %v815 = vpop.f32.mrf.mxu0
        %816 = vmatprep.mubr.bf16.mxu0 0
        %817 = vmatmul.mubr.bf16.gmra.mxu0 %v774
        %v818 = vpop.f32.mrf.mxu0
        %v819 = vadd.f32 0.0, %v818
        %v820 = vpop.f32.mrf.mxu0
        %v821 = vpop.f32.mrf.mxu0
        %v822 = vadd.f32 0.0, %v821
        %v823 = vpop.f32.mrf.mxu0
        %824 = vdwg.mxu0
        %v825 = vmul.f32 %v811, %v749
        %v826 = vmul.f32 %v814, %v754
        %v827 = vmul.f32 %v819, %v759
        %v828 = vmul.f32 %v822, %v764
        %v829 = vld [vmem:[#allocation2] sm:$0xff]
        %v830 = vld [vmem:[#allocation2 + $0x8] sm:$0xff]
        %v831 = vpack.c.bf16 %v767, %v766
        %v832 = vpack.c.bf16 %v769, %v768
        %v833 = vpack.c.bf16 %v826, %v825
        %v834 = vpack.c.bf16 %v828, %v827
        %835 = vxpose.xlu0.c.b16.start [1/8] %v661, 128
        %836 = vxpose.xlu0.c.b16.cont [2/8] %v662, 128
        %837 = vxpose.xlu0.c.b16.cont [3/8] 0, 128
        %838 = vxpose.xlu0.c.b16.cont [4/8] 0, 128
        %839 = vxpose.xlu0.c.b16.cont [5/8] 0, 128
        %840 = vxpose.xlu0.c.b16.cont [6/8] 0, 128
        %841 = vxpose.xlu0.c.b16.cont [7/8] 0, 128
        %842 = vxpose.xlu0.c.b16.end [8/8] 0, 128
        %v843 = vpop.trf.xlu0
        %v844 = vpop.trf.xlu0
        %v845 = vpop.trf.xlu0
        %v846 = vpop.trf.xlu0
        %v847 = vpop.trf.xlu0
        %v848 = vpop.trf.xlu0
        %v849 = vpop.trf.xlu0
        %v850 = vpop.trf.xlu0
        %vm851 = vcmask 261120
        %v853 = vsel %vm851, %v843, 0
        %855 = vmatprep.subr.bf16.mxu0 0
        %856 = vmatpush1.bf16.msra.mxu0 0
        %857 = vmatprep.subr.bf16.mxu0 0
        %858 = vmatpush1.bf16.msra.mxu0 0
        %859 = vmatprep.subr.bf16.mxu0 0
        %860 = vmatpush1.bf16.msra.mxu0 0
        %861 = vmatprep.subr.bf16.mxu0 0
        %862 = vmatpush1.bf16.msra.mxu0 0
        %863 = vmatprep.subr.bf16.mxu0 0
        %864 = vmatpush1.bf16.msra.mxu0 0
        %865 = vmatprep.subr.bf16.mxu0 0
        %866 = vmatpush1.bf16.msra.mxu0 0
        %867 = vmatprep.subr.bf16.mxu0 0
        %868 = vmatpush1.bf16.msra.mxu0 %v834
        %869 = vmatprep.subr.bf16.mxu0 0
        %870 = vmatpush1.bf16.msra.mxu0 %v833
        %871 = vmatprep.subr.bf16.mxu0 0
        %872 = vmatpush2.bf16.msra.mxu0 0
        %873 = vmatprep.subr.bf16.mxu0 0
        %874 = vmatpush2.bf16.msra.mxu0 0
        %875 = vmatprep.subr.bf16.mxu0 0
        %876 = vmatpush2.bf16.msra.mxu0 0
        %877 = vmatprep.subr.bf16.mxu0 0
        %878 = vmatpush2.bf16.msra.mxu0 0
        %879 = vmatprep.subr.bf16.mxu0 0
        %880 = vmatpush2.bf16.msra.mxu0 0
        %881 = vmatprep.subr.bf16.mxu0 0
        %882 = vmatpush2.bf16.msra.mxu0 0
        %883 = vmatprep.subr.bf16.mxu0 0
        %884 = vmatpush2.bf16.msra.mxu0 0
        %885 = vmatprep.subr.bf16.mxu0 0
        %886 = vmatpush2.bf16.msra.mxu0 0
        %887 = vmatprep.mubr.bf16.mxu0 0
        %888 = vmatmul.mubr.bf16.gmra.mxu0 %v853
        %v889 = vpop.f32.mrf.mxu0
        %v890 = vadd.f32 0.0, %v889
        %v891 = vpop.f32.mrf.mxu0
        %v892 = vpop.f32.mrf.mxu0
        %v893 = vadd.f32 0.0, %v892
        %v894 = vpop.f32.mrf.mxu0
        %895 = vdwg.mxu0
        %896 = vxpose.xlu0.c.b16.start [1/8] %v687, 128
        %897 = vxpose.xlu0.c.b16.cont [2/8] %v688, 128
        %898 = vxpose.xlu0.c.b16.cont [3/8] 0, 128
        %899 = vxpose.xlu0.c.b16.cont [4/8] 0, 128
        %900 = vxpose.xlu0.c.b16.cont [5/8] 0, 128
        %901 = vxpose.xlu0.c.b16.cont [6/8] 0, 128
        %902 = vxpose.xlu0.c.b16.cont [7/8] 0, 128
        %903 = vxpose.xlu0.c.b16.end [8/8] 0, 128
        %v904 = vpop.trf.xlu0
        %v905 = vpop.trf.xlu0
        %v906 = vpop.trf.xlu0
        %v907 = vpop.trf.xlu0
        %v908 = vpop.trf.xlu0
        %v909 = vpop.trf.xlu0
        %v910 = vpop.trf.xlu0
        %v911 = vpop.trf.xlu0
        %v913 = vsel %vm851, %v904, 0
        %915 = vmatprep.subr.bf16.mxu0 0
        %916 = vmatpush1.bf16.msra.mxu0 0
        %917 = vmatprep.subr.bf16.mxu0 0
        %918 = vmatpush1.bf16.msra.mxu0 0
        %919 = vmatprep.subr.bf16.mxu0 0
        %920 = vmatpush1.bf16.msra.mxu0 0
        %921 = vmatprep.subr.bf16.mxu0 0
        %922 = vmatpush1.bf16.msra.mxu0 0
        %923 = vmatprep.subr.bf16.mxu0 0
        %924 = vmatpush1.bf16.msra.mxu0 0
        %925 = vmatprep.subr.bf16.mxu0 0
        %926 = vmatpush1.bf16.msra.mxu0 0
        %927 = vmatprep.subr.bf16.mxu0 0
        %928 = vmatpush1.bf16.msra.mxu0 %v832
        %929 = vmatprep.subr.bf16.mxu0 0
        %930 = vmatpush1.bf16.msra.mxu0 %v831
        %931 = vmatprep.subr.bf16.mxu0 0
        %932 = vmatpush2.bf16.msra.mxu0 0
        %933 = vmatprep.subr.bf16.mxu0 0
        %934 = vmatpush2.bf16.msra.mxu0 0
        %935 = vmatprep.subr.bf16.mxu0 0
        %936 = vmatpush2.bf16.msra.mxu0 0
        %937 = vmatprep.subr.bf16.mxu0 0
        %938 = vmatpush2.bf16.msra.mxu0 0
        %939 = vmatprep.subr.bf16.mxu0 0
        %940 = vmatpush2.bf16.msra.mxu0 0
        %941 = vmatprep.subr.bf16.mxu0 0
        %942 = vmatpush2.bf16.msra.mxu0 0
        %943 = vmatprep.subr.bf16.mxu0 0
        %944 = vmatpush2.bf16.msra.mxu0 0
        %945 = vmatprep.subr.bf16.mxu0 0
        %946 = vmatpush2.bf16.msra.mxu0 0
        %947 = vmatprep.mubr.bf16.mxu0 0
        %948 = vmatmul.mubr.bf16.gmra.mxu0 %v913
        %v949 = vpop.f32.mrf.mxu0
        %v950 = vadd.f32 %v890, %v949
        %v951 = vpop.f32.mrf.mxu0
        %v952 = vpop.f32.mrf.mxu0
        %v953 = vadd.f32 %v893, %v952
        %v954 = vpop.f32.mrf.mxu0
        %955 = vdwg.mxu0
        %v956 = vadd.f32 %v829, %v950
        %v957 = vadd.f32 %v830, %v953
        %vm958 = vcmask 64512
        %959 = vst.msk [vmem:[#allocation2] sm:$0xff] %vm958, %v956
        %960 = vst.msk [vmem:[#allocation2 + $0x8] sm:$0xff] %vm958, %v957
        // Predicated region
        $region85: #{tpu_custom_call.1} parent=79 // pred_check
          %p961 = pneg %p614
        $region86: #{tpu_custom_call.1} parent=79 // pred_check_branch
          %963 = sbr.rel (%p961) target = $region88
        $region87: #{tpu_custom_call.1} parent=79 // pred_region
          %v964 = vld [vmem:[#allocation2] sm:$0xff]
          %v965 = vld [vmem:[#allocation2 + $0x8] sm:$0xff]
          %vm966 = vcmp.lt.s32.totalorder %v636, 32
          %v967 = vsel %vm966, 1, 0
          %v968 = vcvt.s32.f32 %v967
          %v969 = vpack.c.bf16 %v965, %v964
          %v970 = vld [vmem:[%s4] sm:$0xf]
          %v971 = vld [vmem:[%s5] sm:$0xf]
          %v973 = vsel %vm958, %v689, 0
          %vm975 = vcmask 1043456
          %v977 = vsel %vm975, %v971, 0
          %979 = vmatprep.subr.bf16.mxu0 0
          %980 = vmatpush1.bf16.msra.mxu0 0
          %981 = vmatprep.subr.bf16.mxu0 0
          %982 = vmatpush1.bf16.msra.mxu0 0
          %983 = vmatprep.subr.bf16.mxu0 0
          %984 = vmatpush1.bf16.msra.mxu0 0
          %985 = vmatprep.subr.bf16.mxu0 0
          %986 = vmatpush1.bf16.msra.mxu0 0
          %987 = vmatprep.subr.bf16.mxu0 0
          %988 = vmatpush1.bf16.msra.mxu0 0
          %989 = vmatprep.subr.bf16.mxu0 0
          %990 = vmatpush1.bf16.msra.mxu0 0
          %991 = vmatprep.subr.bf16.mxu0 0
          %992 = vmatpush1.bf16.msra.mxu0 0
          %993 = vmatprep.subr.bf16.mxu0 0
          %994 = vmatpush1.bf16.msra.mxu0 %v977
          %995 = vmatprep.subr.bf16.mxu0 0
          %996 = vmatpush2.bf16.msra.mxu0 0
          %997 = vmatprep.subr.bf16.mxu0 0
          %998 = vmatpush2.bf16.msra.mxu0 0
          %999 = vmatprep.subr.bf16.mxu0 0
          %1000 = vmatpush2.bf16.msra.mxu0 0
          %1001 = vmatprep.subr.bf16.mxu0 0
          %1002 = vmatpush2.bf16.msra.mxu0 0
          %1003 = vmatprep.subr.bf16.mxu0 0
          %1004 = vmatpush2.bf16.msra.mxu0 0
          %1005 = vmatprep.subr.bf16.mxu0 0
          %1006 = vmatpush2.bf16.msra.mxu0 0
          %1007 = vmatprep.subr.bf16.mxu0 0
          %1008 = vmatpush2.bf16.msra.mxu0 0
          %1009 = vmatprep.subr.bf16.mxu0 0
          %1010 = vmatpush2.bf16.msra.mxu0 0
          %1011 = vmatprep.mubr.bf16.mxu0 0
          %1012 = vmatmul.mubr.bf16.gmra.mxu0 %v973
          %v1013 = vpop.f32.mrf.mxu0
          %v1014 = vadd.f32 0.0, %v1013
          %v1015 = vpop.f32.mrf.mxu0
          %v1016 = vpop.f32.mrf.mxu0
          %v1017 = vadd.f32 0.0, %v1016
          %v1018 = vpop.f32.mrf.mxu0
          %1019 = vdwg.mxu0
          %v1021 = vsel %vm958, %v969, 0
          %v1024 = vsel %vm975, %v970, 0
          %1026 = vmatprep.subr.bf16.mxu0 0
          %1027 = vmatpush1.bf16.msra.mxu0 0
          %1028 = vmatprep.subr.bf16.mxu0 0
          %1029 = vmatpush1.bf16.msra.mxu0 0
          %1030 = vmatprep.subr.bf16.mxu0 0
          %1031 = vmatpush1.bf16.msra.mxu0 0
          %1032 = vmatprep.subr.bf16.mxu0 0
          %1033 = vmatpush1.bf16.msra.mxu0 0
          %1034 = vmatprep.subr.bf16.mxu0 0
          %1035 = vmatpush1.bf16.msra.mxu0 0
          %1036 = vmatprep.subr.bf16.mxu0 0
          %1037 = vmatpush1.bf16.msra.mxu0 0
          %1038 = vmatprep.subr.bf16.mxu0 0
          %1039 = vmatpush1.bf16.msra.mxu0 0
          %1040 = vmatprep.subr.bf16.mxu0 0
          %1041 = vmatpush1.bf16.msra.mxu0 %v1024
          %1042 = vmatprep.subr.bf16.mxu0 0
          %1043 = vmatpush2.bf16.msra.mxu0 0
          %1044 = vmatprep.subr.bf16.mxu0 0
          %1045 = vmatpush2.bf16.msra.mxu0 0
          %1046 = vmatprep.subr.bf16.mxu0 0
          %1047 = vmatpush2.bf16.msra.mxu0 0
          %1048 = vmatprep.subr.bf16.mxu0 0
          %1049 = vmatpush2.bf16.msra.mxu0 0
          %1050 = vmatprep.subr.bf16.mxu0 0
          %1051 = vmatpush2.bf16.msra.mxu0 0
          %1052 = vmatprep.subr.bf16.mxu0 0
          %1053 = vmatpush2.bf16.msra.mxu0 0
          %1054 = vmatprep.subr.bf16.mxu0 0
          %1055 = vmatpush2.bf16.msra.mxu0 0
          %1056 = vmatprep.subr.bf16.mxu0 0
          %1057 = vmatpush2.bf16.msra.mxu0 0
          %1058 = vmatprep.mubr.bf16.mxu0 0
          %1059 = vmatmul.mubr.bf16.gmra.mxu0 %v1021
          %v1060 = vpop.f32.mrf.mxu0
          %v1061 = vadd.f32 %v1014, %v1060
          %v1062 = vpop.f32.mrf.mxu0
          %v1063 = vpop.f32.mrf.mxu0
          %v1064 = vadd.f32 %v1017, %v1063
          %v1065 = vpop.f32.mrf.mxu0
          %1066 = vdwg.mxu0
          %v1067 = vld [vmem:[%s6] sm:$0x1]
          %v1069 = vlaneseq
          %v1070 = vshrl.u32 %v1069, 7
          %v1071 = vsub.s32 0, %v1070
          %v1072 = vrot.slane %v1067, %v1071
          %v1074 = vadd.f32 %v1061, %v1072
          %v1075 = vadd.f32 %v1064, %v1072
          %v1076 = vld [vmem:[%s7] sm:$0x1]
          %v1077 = vld [vmem:[%s8] sm:$0x1]
          %1078 = vadd.xlane.f32.xlu0 %v1074
          %v1079 = vpop.xlane.xlu0 %1078
          %1080 = vadd.xlane.f32.xlu0 %v1075
          %v1081 = vpop.xlane.xlu0 %1080
          %v1082 = vmul.f32 %v1079, 0.03125
          %v1083 = vmul.f32 %v1081, 0.03125
          %v1084 = vsub.f32 %v1074, %v1082
          %v1085 = vsub.f32 %v1075, %v1083
          %v1086 = vmul.f32 %v1084, %v968
          %v1087 = vmul.f32 %v1085, %v968
          %v1088 = vmul.f32 %v1086, %v1086
          %v1089 = vmul.f32 %v1087, %v1087
          %1090 = vadd.xlane.f32.xlu0 %v1088
          %v1091 = vpop.xlane.xlu0 %1090
          %1092 = vadd.xlane.f32.xlu0 %v1089
          %v1093 = vpop.xlane.xlu0 %1092
          %v1094 = vmul.f32 %v1091, 0.03125
          %v1095 = vmul.f32 %v1093, 0.03125
          %v1096 = vadd.f32 %v1094, 1e-05
          %v1097 = vadd.f32 %v1095, 1e-05
          %v1098 = vrsqrt.pop %v1096
          %v1099 = vrsqrt.pop %v1097
          %v1100 = vmul.f32 %v1086, %v1098
          %v1101 = vmul.f32 %v1087, %v1099
          %v1103 = vlaneseq
          %v1104 = vshrl.u32 %v1103, 7
          %v1105 = vsub.s32 0, %v1104
          %v1106 = vrot.slane %v1076, %v1105
          %v1108 = vmul.f32 %v1100, %v1106
          %v1109 = vmul.f32 %v1101, %v1106
          %v1111 = vlaneseq
          %v1112 = vshrl.u32 %v1111, 7
          %v1113 = vsub.s32 0, %v1112
          %v1114 = vrot.slane %v1077, %v1113
          %v1116 = vadd.f32 %v1108, %v1114
          %v1117 = vadd.f32 %v1109, %v1114
          %v1118 = vtanh.pop %v1116
          %v1119 = vtanh.pop %v1117
          %v1120 = vpack.c.bf16 %v1119, %v1118
          %v1121 = vld [vmem:[%s9] sm:$0xf]
          %v1122 = vld [vmem:[%s9 + $0x4] sm:$0xf]
          %v1123 = vld [vmem:[%s9 + $0x8] sm:$0xf]
          %v1124 = vld [vmem:[%s9 + $0xc] sm:$0xf]
          %v1125 = vld [vmem:[%s9 + $0x10] sm:$0xf]
          %v1126 = vld [vmem:[%s9 + $0x14] sm:$0xf]
          %v1127 = vld [vmem:[%s9 + $0x18] sm:$0xf]
          %v1128 = vld [vmem:[%s9 + $0x1c] sm:$0xf]
          %v1129 = vld [vmem:[%s9 + $0x20] sm:$0xf]
          %v1130 = vld [vmem:[%s9 + $0x24] sm:$0xf]
          %v1131 = vld [vmem:[%s9 + $0x28] sm:$0xf]
          %v1132 = vld [vmem:[%s9 + $0x2c] sm:$0xf]
          %v1133 = vld [vmem:[%s9 + $0x30] sm:$0xf]
          %v1134 = vld [vmem:[%s9 + $0x34] sm:$0xf]
          %v1135 = vld [vmem:[%s9 + $0x38] sm:$0xf]
          %v1136 = vld [vmem:[%s9 + $0x3c] sm:$0xf]
          %v1137 = vld [vmem:[%s10] sm:$0x1]
          %v1139 = vlaneseq
          %v1140 = vshrl.u32 %v1139, 7
          %v1141 = vsub.s32 0, %v1140
          %v1142 = vrot.slane %v1137, %v1141
          %v1160 = vunpack.c.l.b16 %v1121
          %v1161 = vunpack.c.l.b16 %v1122
          %v1162 = vunpack.c.l.b16 %v1123
          %v1163 = vunpack.c.l.b16 %v1124
          %v1164 = vunpack.c.l.b16 %v1125
          %v1165 = vunpack.c.l.b16 %v1126
          %v1166 = vunpack.c.l.b16 %v1127
          %v1167 = vunpack.c.l.b16 %v1128
          %v1168 = vunpack.c.l.b16 %v1129
          %v1169 = vunpack.c.l.b16 %v1130
          %v1170 = vunpack.c.l.b16 %v1131
          %v1171 = vunpack.c.l.b16 %v1132
          %v1172 = vunpack.c.l.b16 %v1133
          %v1173 = vunpack.c.l.b16 %v1134
          %v1174 = vunpack.c.l.b16 %v1135
          %v1175 = vunpack.c.l.b16 %v1136
          %v1176 = vpack.c.b16 %v1161, %v1160
          %v1177 = vpack.c.b16 %v1163, %v1162
          %v1178 = vpack.c.b16 %v1165, %v1164
          %v1179 = vpack.c.b16 %v1167, %v1166
          %v1180 = vpack.c.b16 %v1169, %v1168
          %v1181 = vpack.c.b16 %v1171, %v1170
          %v1182 = vpack.c.b16 %v1173, %v1172
          %v1183 = vpack.c.b16 %v1175, %v1174
          %1192 = vmatprep.subr.bf16.mxu0 0
          %1193 = vmatpush1.bf16.msra.mxu0 %v1183
          %1194 = vmatprep.subr.bf16.mxu0 0
          %1195 = vmatpush1.bf16.msra.mxu0 %v1182
          %1196 = vmatprep.subr.bf16.mxu0 0
          %1197 = vmatpush1.bf16.msra.mxu0 %v1181
          %1198 = vmatprep.subr.bf16.mxu0 0
          %1199 = vmatpush1.bf16.msra.mxu0 %v1180
          %1200 = vmatprep.subr.bf16.mxu0 0
          %1201 = vmatpush1.bf16.msra.mxu0 %v1179
          %1202 = vmatprep.subr.bf16.mxu0 0
          %1203 = vmatpush1.bf16.msra.mxu0 %v1178
          %1204 = vmatprep.subr.bf16.mxu0 0
          %1205 = vmatpush1.bf16.msra.mxu0 %v1177
          %1206 = vmatprep.subr.bf16.mxu0 0
          %1207 = vmatpush1.bf16.msra.mxu0 %v1176
          %1208 = vmatprep.subr.bf16.mxu0 0
          %1209 = vmatpush2.bf16.msra.mxu0 0
          %1210 = vmatprep.subr.bf16.mxu0 0
          %1211 = vmatpush2.bf16.msra.mxu0 0
          %1212 = vmatprep.subr.bf16.mxu0 0
          %1213 = vmatpush2.bf16.msra.mxu0 0
          %1214 = vmatprep.subr.bf16.mxu0 0
          %1215 = vmatpush2.bf16.msra.mxu0 0
          %1216 = vmatprep.subr.bf16.mxu0 0
          %1217 = vmatpush2.bf16.msra.mxu0 0
          %1218 = vmatprep.subr.bf16.mxu0 0
          %1219 = vmatpush2.bf16.msra.mxu0 0
          %1220 = vmatprep.subr.bf16.mxu0 0
          %1221 = vmatpush2.bf16.msra.mxu0 0
          %1222 = vmatprep.subr.bf16.mxu0 0
          %1223 = vmatpush2.bf16.msra.mxu0 0
          %1224 = vmatprep.mubr.bf16.mxu0 0
          %1225 = vmatmul.mubr.bf16.gmra.mxu0 %v1120
          %v1226 = vpop.f32.mrf.mxu0
          %v1227 = vadd.f32 %v1142, %v1226
          %v1228 = vpop.f32.mrf.mxu0
          %v1229 = vpop.f32.mrf.mxu0
          %v1230 = vadd.f32 %v1142, %v1229
          %v1231 = vpop.f32.mrf.mxu0
          %1232 = vdwg.mxu0
          %v1233 = vld [vmem:[%s11] sm:$0x1]
          %v1234 = vld [vmem:[%s12] sm:$0x1]
          %1235 = vadd.xlane.f32.xlu0 %v1227
          %v1236 = vpop.xlane.xlu0 %1235
          %1237 = vadd.xlane.f32.xlu0 %v1230
          %v1238 = vpop.xlane.xlu0 %1237
          %v1239 = vmul.f32 %v1236, 0.03125
          %v1240 = vmul.f32 %v1238, 0.03125
          %v1241 = vsub.f32 %v1227, %v1239
          %v1242 = vsub.f32 %v1230, %v1240
          %v1243 = vmul.f32 %v1241, %v968
          %v1244 = vmul.f32 %v1242, %v968
          %v1245 = vmul.f32 %v1243, %v1243
          %v1246 = vmul.f32 %v1244, %v1244
          %1247 = vadd.xlane.f32.xlu0 %v1245
          %v1248 = vpop.xlane.xlu0 %1247
          %1249 = vadd.xlane.f32.xlu0 %v1246
          %v1250 = vpop.xlane.xlu0 %1249
          %v1251 = vmul.f32 %v1248, 0.03125
          %v1252 = vmul.f32 %v1250, 0.03125
          %v1253 = vadd.f32 %v1251, 1e-05
          %v1254 = vadd.f32 %v1252, 1e-05
          %v1255 = vrsqrt.pop %v1253
          %v1256 = vrsqrt.pop %v1254
          %v1257 = vmul.f32 %v1243, %v1255
          %v1258 = vmul.f32 %v1244, %v1256
          %v1260 = vlaneseq
          %v1261 = vshrl.u32 %v1260, 7
          %v1262 = vsub.s32 0, %v1261
          %v1263 = vrot.slane %v1233, %v1262
          %v1265 = vmul.f32 %v1257, %v1263
          %v1266 = vmul.f32 %v1258, %v1263
          %v1268 = vlaneseq
          %v1269 = vshrl.u32 %v1268, 7
          %v1270 = vsub.s32 0, %v1269
          %v1271 = vrot.slane %v1234, %v1270
          %v1273 = vadd.f32 %v1265, %v1271
          %v1274 = vadd.f32 %v1266, %v1271
          %v1275 = vtanh.pop %v1273
          %v1276 = vtanh.pop %v1274
          %v1277 = vpack.c.bf16 %v1276, %v1275
          %v1278 = vld [vmem:[%s13] sm:$0xf]
          %v1279 = vld [vmem:[%s13 + $0x4] sm:$0xf]
          %v1280 = vld [vmem:[%s13 + $0x8] sm:$0xf]
          %v1281 = vld [vmem:[%s13 + $0xc] sm:$0xf]
          %v1282 = vld [vmem:[%s13 + $0x10] sm:$0xf]
          %v1283 = vld [vmem:[%s13 + $0x14] sm:$0xf]
          %v1284 = vld [vmem:[%s13 + $0x18] sm:$0xf]
          %v1285 = vld [vmem:[%s13 + $0x1c] sm:$0xf]
          %v1286 = vld [vmem:[%s13 + $0x20] sm:$0xf]
          %v1287 = vld [vmem:[%s13 + $0x24] sm:$0xf]
          %v1288 = vld [vmem:[%s13 + $0x28] sm:$0xf]
          %v1289 = vld [vmem:[%s13 + $0x2c] sm:$0xf]
          %v1290 = vld [vmem:[%s13 + $0x30] sm:$0xf]
          %v1291 = vld [vmem:[%s13 + $0x34] sm:$0xf]
          %v1292 = vld [vmem:[%s13 + $0x38] sm:$0xf]
          %v1293 = vld [vmem:[%s13 + $0x3c] sm:$0xf]
          %v1294 = vld [vmem:[%s14] sm:$0x1]
          %v1296 = vlaneseq
          %v1297 = vshrl.u32 %v1296, 7
          %v1298 = vsub.s32 0, %v1297
          %v1299 = vrot.slane %v1294, %v1298
          %v1317 = vunpack.c.l.b16 %v1278
          %v1318 = vunpack.c.l.b16 %v1279
          %v1319 = vunpack.c.l.b16 %v1280
          %v1320 = vunpack.c.l.b16 %v1281
          %v1321 = vunpack.c.l.b16 %v1282
          %v1322 = vunpack.c.l.b16 %v1283
          %v1323 = vunpack.c.l.b16 %v1284
          %v1324 = vunpack.c.l.b16 %v1285
          %v1325 = vunpack.c.l.b16 %v1286
          %v1326 = vunpack.c.l.b16 %v1287
          %v1327 = vunpack.c.l.b16 %v1288
          %v1328 = vunpack.c.l.b16 %v1289
          %v1329 = vunpack.c.l.b16 %v1290
          %v1330 = vunpack.c.l.b16 %v1291
          %v1331 = vunpack.c.l.b16 %v1292
          %v1332 = vunpack.c.l.b16 %v1293
          %v1333 = vpack.c.b16 %v1318, %v1317
          %v1334 = vpack.c.b16 %v1320, %v1319
          %v1335 = vpack.c.b16 %v1322, %v1321
          %v1336 = vpack.c.b16 %v1324, %v1323
          %v1337 = vpack.c.b16 %v1326, %v1325
          %v1338 = vpack.c.b16 %v1328, %v1327
          %v1339 = vpack.c.b16 %v1330, %v1329
          %v1340 = vpack.c.b16 %v1332, %v1331
          %1349 = vmatprep.subr.bf16.mxu0 0
          %1350 = vmatpush1.bf16.msra.mxu0 %v1340
          %1351 = vmatprep.subr.bf16.mxu0 0
          %1352 = vmatpush1.bf16.msra.mxu0 %v1339
          %1353 = vmatprep.subr.bf16.mxu0 0
          %1354 = vmatpush1.bf16.msra.mxu0 %v1338
          %1355 = vmatprep.subr.bf16.mxu0 0
          %1356 = vmatpush1.bf16.msra.mxu0 %v1337
          %1357 = vmatprep.subr.bf16.mxu0 0
          %1358 = vmatpush1.bf16.msra.mxu0 %v1336
          %1359 = vmatprep.subr.bf16.mxu0 0
          %1360 = vmatpush1.bf16.msra.mxu0 %v1335
          %1361 = vmatprep.subr.bf16.mxu0 0
          %1362 = vmatpush1.bf16.msra.mxu0 %v1334
          %1363 = vmatprep.subr.bf16.mxu0 0
          %1364 = vmatpush1.bf16.msra.mxu0 %v1333
          %1365 = vmatprep.subr.bf16.mxu0 0
          %1366 = vmatpush2.bf16.msra.mxu0 0
          %1367 = vmatprep.subr.bf16.mxu0 0
          %1368 = vmatpush2.bf16.msra.mxu0 0
          %1369 = vmatprep.subr.bf16.mxu0 0
          %1370 = vmatpush2.bf16.msra.mxu0 0
          %1371 = vmatprep.subr.bf16.mxu0 0
          %1372 = vmatpush2.bf16.msra.mxu0 0
          %1373 = vmatprep.subr.bf16.mxu0 0
          %1374 = vmatpush2.bf16.msra.mxu0 0
          %1375 = vmatprep.subr.bf16.mxu0 0
          %1376 = vmatpush2.bf16.msra.mxu0 0
          %1377 = vmatprep.subr.bf16.mxu0 0
          %1378 = vmatpush2.bf16.msra.mxu0 0
          %1379 = vmatprep.subr.bf16.mxu0 0
          %1380 = vmatpush2.bf16.msra.mxu0 0
          %1381 = vmatprep.mubr.bf16.mxu0 0
          %1382 = vmatmul.mubr.bf16.gmra.mxu0 %v1277
          %v1383 = vpop.f32.mrf.mxu0
          %v1384 = vadd.f32 %v1299, %v1383
          %v1385 = vpop.f32.mrf.mxu0
          %v1386 = vpop.f32.mrf.mxu0
          %v1387 = vadd.f32 %v1299, %v1386
          %v1388 = vpop.f32.mrf.mxu0
          %1389 = vdwg.mxu0
          %1390 = vst [vmem:[%s577] sm:$0xff] %v1384
          %1391 = vst [vmem:[%s577 + $0x8] sm:$0xff] %v1387
        $region88: #{tpu_custom_call.1} parent=79 // pred_fallthru
          _
        %s1392 = sand.u32 %s390, 1
        %s1393 = scalar_lea.sflag [#allocation4], %s1392
        %s1394 = sand.u32 %s390, 1
        %s1395 = smul.addr %s1394, 16
        %s1396 = scalar_lea.vmem [#allocation3], %s1395
        // Predicated region
        $region89: #{tpu_custom_call.1} parent=79 // pred_check
          %p1397 = pneg %p400
        $region90: #{tpu_custom_call.1} parent=79 // pred_check_branch
          %1399 = sbr.rel (%p1397) target = $region92
        $region91: #{tpu_custom_call.1} parent=79 // pred_region
          %s1401 = ssub.s32 256, 256
          %1402 = vsyncadd %s1393, %s1401
          %s1403 = smul.addr %s33, 2
          %s1404 = smul.addr %s1403, 128
          %s1405 = scalar_lea.hbm %s15, %s1404
          %s1406 = sshll.u32 %s1396, 4
          %s1407 = int_to_ptr.vmem [resolvable:$true] %s1406
          %1412 = dma.vmem_to_hbm [thread:$0]  %s1407, 256, %s1405, %s1393, 128, 128, 8
        $region92: #{tpu_custom_call.1} parent=79 // pred_fallthru
          _
      $region80: #{tpu_custom_call.1} parent=5 // pred_fallthru
        _
      %p1413 = scmp.le.s32.totalorder 2, %s24
      // Predicated region
      $region93: #{tpu_custom_call.1} parent=5 // pred_check
        %p1414 = pneg %p1413
      $region94: #{tpu_custom_call.1} parent=5 // pred_check_branch
        %1416 = sbr.rel (%p1414) target = $region96
      $region95: #{tpu_custom_call.1} parent=5 // pred_region
        %s1417 = ssub.s32 %s24, 2
        // Predicated region
        $region97: #{tpu_custom_call.1} parent=95 // pred_check
          %p1418 = pneg %p406
        $region98: #{tpu_custom_call.1} parent=95 // pred_check_branch
          %1420 = sbr.rel (%p1418) target = $region100
        $region99: #{tpu_custom_call.1} parent=95 // pred_region
          %s1421 = sand.u32 %s391, 1
          %s1422 = scalar_lea.sflag [#allocation4], %s1421
          %s1423 = sand.u32 %s391, 1
          %s1424 = smul.addr %s1423, 16
          %s1425 = scalar_lea.vmem [#allocation3], %s1424
          %1426 = dma.done %s1422, 256
        $region100: #{tpu_custom_call.1} parent=95 // pred_fallthru
          _
      $region96: #{tpu_custom_call.1} parent=5 // pred_fallthru
        _
    $region6: #{tpu_custom_call.1} parent=1 // loop_footer
      %s28 = sadd.s32 1, %s24
    $region7: #{tpu_custom_call.1} parent=1 // loop_footer_branch
      %23 = sbr.rel target = $region3
    $region8: #{tpu_custom_call.1} parent=1 // loop_exit
      _
    %1427 = vsyncpa [#allocation4], 1
    %s1428 = scalar_lea.sflag [#allocation4], 1
    %1429 = vsyncpa %s1428, 1

</llo_original>
